<compile_context>
chip_gen: v7x
topology: tpu7x:2x2x1
jax: 0.10.0
libtpu: 0.0.40
codegen_flags: <defaults>
</compile_context>

<pallas_src>
import functools

import jax
import jax.numpy as jnp
from jax import lax
from jax.experimental import pallas as pl
from jax.experimental.pallas import tpu as pltpu


_VMEM_LIMIT_BYTES = 48 * 1024 * 1024    # below v7x's 64 MiB physical VMEM
_BLOCK_BUDGET_BYTES = 24 * 1024 * 1024  # double-buffered in+out blocks per step


def _pick_spatial_tile(S, cin, c8, *, cap=4096):
    """Largest multiple-of-128 divisor of S (<= cap) whose double-buffered
    input+output block footprint fits the VMEM budget; falls back to the
    full spatial extent (full-dim blocks are always legal)."""
    bytes_per_row = 2 * 4 * (cin + c8)          # f32, double-buffered in + out
    limit = max(128, _BLOCK_BUDGET_BYTES // bytes_per_row)
    best = None
    t = 128
    while t <= min(S, cap, limit):
        if S % t == 0:
            best = t
        t += 128
    return best if best is not None else S


# ---------------------------------------------------------------------------
# Kernel 1: Gram-matrix batch statistics.  Reads only X (N, Cin, S).
# Outputs per-batch-item G = X X^T and the per-channel spatial sum of X.
# ---------------------------------------------------------------------------
def _stats_kernel(x_ref, gram_ref, xsum_ref):
    @pl.when(pl.program_id(1) == 0)
    def _():
        gram_ref[...] = jnp.zeros_like(gram_ref)
        xsum_ref[...] = jnp.zeros_like(xsum_ref)

    x = x_ref[...]                                        # (Cin, ts)
    gram_ref[...] += lax.dot_general(
        x, x, (((1,), (1,)), ((), ())),                   # contract spatial axis
        preferred_element_type=jnp.float32)               # (Cin, Cin)
    xsum_ref[...] += jnp.sum(x, axis=1, keepdims=True)    # (Cin, 1)


def _upconv_stats(x3, ts):
    N, Cin, S = x3.shape
    return pl.pallas_call(
        _stats_kernel,
        out_shape=(jax.ShapeDtypeStruct((N, Cin, Cin), jnp.float32),
                   jax.ShapeDtypeStruct((N, Cin, 1), jnp.float32)),
        grid_spec=pltpu.PrefetchScalarGridSpec(
            num_scalar_prefetch=0,
            grid=(N, S // ts),
            in_specs=[pl.BlockSpec((None, Cin, ts), lambda n, s: (n, 0, s))],
            out_specs=(pl.BlockSpec((None, Cin, Cin), lambda n, s: (n, 0, 0)),
                       pl.BlockSpec((None, Cin, 1), lambda n, s: (n, 0, 0))),
        ),
        compiler_params=pltpu.CompilerParams(
            dimension_semantics=("parallel", "arbitrary"),
            vmem_limit_bytes=_VMEM_LIMIT_BYTES),
    )(x3)


# ---------------------------------------------------------------------------
# Kernel 2: fused (transposed-conv-as-matmul) + BatchNorm affine + PReLU.
# Single read of X, single write of the output; no bias (cancels under BN).
# Output layout (N, 8*Cout, S) keeps the spatial extent on the lane axis.
# ---------------------------------------------------------------------------
def _apply_kernel(x_ref, wt_ref, scale_ref, shift_ref, alpha_ref, o_ref):
    y = jnp.dot(wt_ref[...], x_ref[...],
                preferred_element_type=jnp.float32)       # (C8, ts)
    z = y * scale_ref[...] + shift_ref[...]               # per-row BN affine
    a = alpha_ref[0]                                      # PReLU slope (SMEM)
    o_ref[...] = jnp.where(z >= 0, z, a * z)


def _upconv_bn_prelu(x3, w2d_t, scale_col, shift_col, alpha_arr, ts):
    N, Cin, S = x3.shape
    C8 = w2d_t.shape[0]
    return pl.pallas_call(
        _apply_kernel,
        out_shape=jax.ShapeDtypeStruct((N, C8, S), jnp.float32),
        grid_spec=pltpu.PrefetchScalarGridSpec(
            num_scalar_prefetch=0,
            grid=(N, S // ts),
            in_specs=[
                pl.BlockSpec((None, Cin, ts), lambda n, s: (n, 0, s)),
                pl.BlockSpec((C8, Cin), lambda n, s: (0, 0)),
                pl.BlockSpec((C8, 1), lambda n, s: (0, 0)),
                pl.BlockSpec((C8, 1), lambda n, s: (0, 0)),
                pl.BlockSpec(memory_space=pltpu.MemorySpace.SMEM),
            ],
            out_specs=pl.BlockSpec((None, C8, ts), lambda n, s: (n, 0, s)),
        ),
        compiler_params=pltpu.CompilerParams(
            dimension_semantics=("parallel", "parallel"),
            vmem_limit_bytes=_VMEM_LIMIT_BYTES),
    )(x3, w2d_t, scale_col, shift_col, alpha_arr)


# ---------------------------------------------------------------------------
# Full UpSampling forward (jitted so the tiny XLA glue fuses around the
# two pallas_calls).
# ---------------------------------------------------------------------------
@functools.partial(jax.jit, static_argnames=("eps",))
def upsampling_forward(x, params, *, eps=1e-5):
    """x: (N, Cin, D, H, W) f32 -> (N, Cout, 2D, 2H, 2W) f32."""
    w, gamma, beta, alpha = (params["w"], params["gamma"], params["beta"],
                             params["alpha"])
    # params["b"] is intentionally unused: a per-channel conv bias is cancelled
    # exactly by training-mode BatchNorm (it only shifts the batch mean).
    N, Cin, D, H, W = x.shape
    Cout = w.shape[1]
    S = D * H * W
    C8 = 8 * Cout

    x3 = x.reshape(N, Cin, S).astype(jnp.float32)          # free reshape, no transpose
    # weight columns ordered (kd, kh, kw, co):  j = (kd*4 + kh*2 + kw)*Cout + co
    w2d = jnp.transpose(w, (0, 2, 3, 4, 1)).reshape(Cin, C8).astype(jnp.float32)
    w2d_t = w2d.T                                          # (C8, Cin), tiny tensor

    ts = _pick_spatial_tile(S, Cin, C8)

    # ---- Pallas pass 1: Gram-matrix batch statistics (reads only X) ----
    gram_n, xsum_n = _upconv_stats(x3, ts)
    gram = gram_n.sum(axis=0)                              # (Cin, Cin)
    xsum = xsum_n.sum(axis=0)[:, 0]                        # (Cin,)

    # ---- tiny glue: per-channel mean / var from the Gram statistics ----
    w3 = w2d.reshape(Cin, 8, Cout)
    n_elems = jnp.float32(N * S * 8)
    ch_sum = jnp.einsum("a,akc->c", xsum, w3)
    ch_sumsq = jnp.einsum("akc,ab,bkc->c", w3, gram, w3)
    mean = ch_sum / n_elems
    var = jnp.maximum(ch_sumsq / n_elems - mean * mean, 0.0)
    scale = gamma / jnp.sqrt(var + eps)
    shift = beta - mean * scale
    scale_col = jnp.tile(scale, (8,)).reshape(C8, 1).astype(jnp.float32)
    shift_col = jnp.tile(shift, (8,)).reshape(C8, 1).astype(jnp.float32)
    alpha_arr = jnp.asarray(alpha, jnp.float32).reshape(1)

    # ---- Pallas pass 2: fused matmul + BN + PReLU (1 read X, 1 write O) ----
    o3 = _upconv_bn_prelu(x3, w2d_t, scale_col, shift_col, alpha_arr, ts)

    # ---- glue: interleave (kd, kh, kw) back into NCDHW' ----
    # TODO(synk): this transpose is one extra read+write of the output in XLA;
    # a strided-scatter out layout could fuse it, but with 2W << 128 lanes the
    # in-kernel stores would become masked partial writes, so it stays in XLA.
    o = o3.reshape(N, 2, 2, 2, Cout, D, H, W)
    o = jnp.transpose(o, (0, 4, 5, 1, 6, 2, 7, 3))         # (N,Cout,D,kd,H,kh,W,kw)
    return o.reshape(N, Cout, 2 * D, 2 * H, 2 * W).astype(x.dtype)


# ---------------------------------------------------------------------------
# Pure-JAX reference with the exact PyTorch semantics (conv bias included,
# training-mode BatchNorm, shared-alpha PReLU) for the correctness check.
# ---------------------------------------------------------------------------
def reference_forward(x, params, *, eps=1e-5):
    w, b, gamma, beta, alpha = (params["w"], params["b"], params["gamma"],
                                params["beta"], params["alpha"])
    N, Cin, D, H, W = x.shape
    Cout = w.shape[1]
    M = N * D * H * W
    x2d = jnp.transpose(x, (0, 2, 3, 4, 1)).reshape(M, Cin)
    w2d = jnp.transpose(w, (0, 2, 3, 4, 1)).reshape(Cin, 8 * Cout)
    y = x2d @ w2d + jnp.tile(b, (8,))[None, :]
    yk = y.reshape(M, 8, Cout)
    mean = yk.mean(axis=(0, 1))
    var = ((yk - mean) ** 2).mean(axis=(0, 1))
    z = (yk - mean) / jnp.sqrt(var + eps) * gamma + beta
    z = jnp.where(z >= 0, z, alpha * z).reshape(M, 8 * Cout)
    o = z.reshape(N, D, H, W, 2, 2, 2, Cout)
    o = jnp.transpose(o, (0, 7, 1, 4, 2, 5, 3, 6))
    return o.reshape(N, Cout, 2 * D, 2 * H, 2 * W)


if __name__ == "__main__":
    # Small shapes consistent with a V-Net UpSampling block.
    N, Cin, Cout = 2, 4, 8
    D = H = W = 8                      # S = D*H*W = 512 (multiple of 128)

    key = jax.random.PRNGKey(0)
    k1, k2, k3, k4, k5 = jax.random.split(key, 5)

    x = jax.random.normal(k1, (N, Cin, D, H, W), jnp.float32)
    params = {
        # ConvTranspose3d weight layout: (Cin, Cout, kd, kh, kw)
        "w": jax.random.normal(k2, (Cin, Cout, 2, 2, 2), jnp.float32) * 0.1,
        "b": jax.random.normal(k3, (Cout,), jnp.float32) * 0.1,
        "gamma": 1.0 + 0.1 * jax.random.normal(k4, (Cout,), jnp.float32),
        "beta": 0.1 * jax.random.normal(k5, (Cout,), jnp.float32),
        "alpha": jnp.float32(0.25),    # PReLU default init
    }

    out = jax.block_until_ready(upsampling_forward(x, params))
    assert out.shape == (N, Cout, 2 * D, 2 * H, 2 * W), out.shape

    ref = jax.block_until_ready(reference_forward(x, params))
    if not jnp.allclose(out, ref, atol=2e-4, rtol=2e-4):
        max_diff = float(jnp.max(jnp.abs(out - ref)))
        raise AssertionError(f"Pallas output mismatch, max|diff|={max_diff:.3e}")

    print("KERNEL_OK")
</pallas_src>

<mosaic_0001>
module attributes {stable_mosaic.version = 11 : i64} {
  func.func @_stats_kernel(%arg0: i32, %arg1: i32, %arg2: memref<1x4x512xf32, #tpu.memory_space<vmem>>, %arg3: memref<1x4x4xf32, #tpu.memory_space<vmem>>, %arg4: memref<1x4x1xf32, #tpu.memory_space<vmem>>) attributes {dimension_semantics = [#tpu.dimension_semantics<parallel>, #tpu.dimension_semantics<arbitrary>], iteration_bounds = array<i64: 2, 1>, scalar_prefetch = 0 : i64, scratch_operands = 0 : i64, tpu.core_type = #tpu.core_type<tc>, window_params = [{transform_indices = @transform_0, window_bounds = array<i64: 1, 4, 512>}, {transform_indices = @transform_1, window_bounds = array<i64: 1, 4, 4>}, {transform_indices = @transform_2, window_bounds = array<i64: 1, 4, 1>}]} {
    %c0_i32 = arith.constant 0 : i32
    %0 = arith.cmpi eq, %arg1, %c0_i32 : i32
    %1 = arith.extui %0 : i1 to i32
    %c0_i32_0 = arith.constant 0 : i32
    %2 = arith.cmpi ne, %1, %c0_i32_0 : i32
    scf.if %2 {
      %cst_16 = arith.constant 0.000000e+00 : f32
      %20 = vector.broadcast %cst_16 : f32 to vector<4x4xf32>
      %c0_17 = arith.constant 0 : index
      %c0_18 = arith.constant 0 : index
      %c0_19 = arith.constant 0 : index
      %21 = vector.load %arg3[%c0_17, %c0_18, %c0_19] : memref<1x4x4xf32, #tpu.memory_space<vmem>>, vector<1x4x4xf32>
      %22 = vector.shape_cast %21 : vector<1x4x4xf32> to vector<4x4xf32>
      %23 = vector.shape_cast %20 : vector<4x4xf32> to vector<1x4x4xf32>
      tpu.vector_store %arg3[%c0_17, %c0_18, %c0_19], %23 {strides = array<i32>} : memref<1x4x4xf32, #tpu.memory_space<vmem>>, vector<1x4x4xf32>,
      %cst_20 = arith.constant 0.000000e+00 : f32
      %24 = vector.broadcast %cst_20 : f32 to vector<4x1xf32>
      %c0_21 = arith.constant 0 : index
      %c0_22 = arith.constant 0 : index
      %c0_23 = arith.constant 0 : index
      %25 = vector.load %arg4[%c0_21, %c0_22, %c0_23] : memref<1x4x1xf32, #tpu.memory_space<vmem>>, vector<1x4x1xf32>
      %26 = vector.shape_cast %25 : vector<1x4x1xf32> to vector<4x1xf32>
      %27 = vector.shape_cast %24 : vector<4x1xf32> to vector<1x4x1xf32>
      tpu.vector_store %arg4[%c0_21, %c0_22, %c0_23], %27 {strides = array<i32>} : memref<1x4x1xf32, #tpu.memory_space<vmem>>, vector<1x4x1xf32>,
    } else {
    }
    %c0 = arith.constant 0 : index
    %c0_1 = arith.constant 0 : index
    %c0_2 = arith.constant 0 : index
    %3 = vector.load %arg2[%c0, %c0_1, %c0_2] : memref<1x4x512xf32, #tpu.memory_space<vmem>>, vector<1x4x512xf32>
    %4 = vector.shape_cast %3 : vector<1x4x512xf32> to vector<4x512xf32>
    %c0_3 = arith.constant 0 : index
    %c0_4 = arith.constant 0 : index
    %c0_5 = arith.constant 0 : index
    %5 = vector.load %arg3[%c0_3, %c0_4, %c0_5] : memref<1x4x4xf32, #tpu.memory_space<vmem>>, vector<1x4x4xf32>
    %6 = vector.shape_cast %5 : vector<1x4x4xf32> to vector<4x4xf32>
    %cst = arith.constant dense<0.000000e+00> : vector<4x4xf32>
    %7 = tpu.matmul %4, %4, %cst {dimension_numbers = #tpu.dot_dimension_numbers<[1], [1], [0], [0], [0, 0, 1, 0], [], []>} : vector<4x512xf32>, vector<4x512xf32>, vector<4x4xf32> -> vector<4x4xf32>
    %8 = arith.addf %6, %7 : vector<4x4xf32>
    %c0_6 = arith.constant 0 : index
    %c0_7 = arith.constant 0 : index
    %c0_8 = arith.constant 0 : index
    %9 = vector.load %arg3[%c0_6, %c0_7, %c0_8] : memref<1x4x4xf32, #tpu.memory_space<vmem>>, vector<1x4x4xf32>
    %10 = vector.shape_cast %9 : vector<1x4x4xf32> to vector<4x4xf32>
    %11 = vector.shape_cast %8 : vector<4x4xf32> to vector<1x4x4xf32>
    tpu.vector_store %arg3[%c0_6, %c0_7, %c0_8], %11 {strides = array<i32>} : memref<1x4x4xf32, #tpu.memory_space<vmem>>, vector<1x4x4xf32>,
    %c0_9 = arith.constant 0 : index
    %c0_10 = arith.constant 0 : index
    %c0_11 = arith.constant 0 : index
    %12 = vector.load %arg4[%c0_9, %c0_10, %c0_11] : memref<1x4x1xf32, #tpu.memory_space<vmem>>, vector<1x4x1xf32>
    %13 = vector.shape_cast %12 : vector<1x4x1xf32> to vector<4x1xf32>
    %cst_12 = arith.constant dense<0.000000e+00> : vector<4xf32>
    %14 = vector.multi_reduction <add>, %4, %cst_12 [1] : vector<4x512xf32> to vector<4xf32>
    %15 = vector.shape_cast %14 : vector<4xf32> to vector<4x1xf32>
    %16 = arith.addf %13, %15 : vector<4x1xf32>
    %c0_13 = arith.constant 0 : index
    %c0_14 = arith.constant 0 : index
    %c0_15 = arith.constant 0 : index
    %17 = vector.load %arg4[%c0_13, %c0_14, %c0_15] : memref<1x4x1xf32, #tpu.memory_space<vmem>>, vector<1x4x1xf32>
    %18 = vector.shape_cast %17 : vector<1x4x1xf32> to vector<4x1xf32>
    %19 = vector.shape_cast %16 : vector<4x1xf32> to vector<1x4x1xf32>
    tpu.vector_store %arg4[%c0_13, %c0_14, %c0_15], %19 {strides = array<i32>} : memref<1x4x1xf32, #tpu.memory_space<vmem>>, vector<1x4x1xf32>,
    return
  }
  func.func @transform_0(%arg0: i32, %arg1: i32) -> (i32, i32, i32) {
    %c0_i32 = arith.constant 0 : i32
    %c0_i32_0 = arith.constant 0 : i32
    return %arg0, %c0_i32, %arg1 : i32, i32, i32
  }
  func.func @transform_1(%arg0: i32, %arg1: i32) -> (i32, i32, i32) {
    %c0_i32 = arith.constant 0 : i32
    %c0_i32_0 = arith.constant 0 : i32
    %c0_i32_1 = arith.constant 0 : i32
    return %arg0, %c0_i32, %c0_i32_0 : i32, i32, i32
  }
  func.func @transform_2(%arg0: i32, %arg1: i32) -> (i32, i32, i32) {
    %c0_i32 = arith.constant 0 : i32
    %c0_i32_0 = arith.constant 0 : i32
    %c0_i32_1 = arith.constant 0 : i32
    return %arg0, %c0_i32, %c0_i32_0 : i32, i32, i32
  }
}

module attributes {stable_mosaic.version = 11 : i64} {
  func.func @_apply_kernel(%arg0: i32, %arg1: i32, %arg2: memref<1x4x512xf32, #tpu.memory_space<vmem>>, %arg3: memref<64x4xf32, #tpu.memory_space<vmem>>, %arg4: memref<64x1xf32, #tpu.memory_space<vmem>>, %arg5: memref<64x1xf32, #tpu.memory_space<vmem>>, %arg6: memref<1xf32, #tpu.memory_space<smem>>, %arg7: memref<1x64x512xf32, #tpu.memory_space<vmem>>) attributes {dimension_semantics = [#tpu.dimension_semantics<parallel>, #tpu.dimension_semantics<parallel>], iteration_bounds = array<i64: 2, 1>, scalar_prefetch = 0 : i64, scratch_operands = 0 : i64, tpu.core_type = #tpu.core_type<tc>, window_params = [{transform_indices = @transform_0, window_bounds = array<i64: 1, 4, 512>}, {pipeline_mode = #tpu.pipeline_mode<synchronous>, transform_indices = @transform_1, window_bounds = array<i64: 64, 4>}, {pipeline_mode = #tpu.pipeline_mode<synchronous>, transform_indices = @transform_2, window_bounds = array<i64: 64, 1>}, {pipeline_mode = #tpu.pipeline_mode<synchronous>, transform_indices = @transform_3, window_bounds = array<i64: 64, 1>}, {transform_indices = @transform_4, window_bounds = array<i64: 1>}, {transform_indices = @transform_5, window_bounds = array<i64: 1, 64, 512>}]} {
    %c0 = arith.constant 0 : index
    %c0_0 = arith.constant 0 : index
    %0 = vector.load %arg3[%c0, %c0_0] : memref<64x4xf32, #tpu.memory_space<vmem>>, vector<64x4xf32>
    %c0_1 = arith.constant 0 : index
    %c0_2 = arith.constant 0 : index
    %c0_3 = arith.constant 0 : index
    %1 = vector.load %arg2[%c0_1, %c0_2, %c0_3] : memref<1x4x512xf32, #tpu.memory_space<vmem>>, vector<1x4x512xf32>
    %2 = vector.shape_cast %1 : vector<1x4x512xf32> to vector<4x512xf32>
    %cst = arith.constant dense<0.000000e+00> : vector<64x512xf32>
    %3 = tpu.matmul %0, %2, %cst {dimension_numbers = #tpu.dot_dimension_numbers<[1], [0], [0], [1], [0, 0, 1, 1], [], []>} : vector<64x4xf32>, vector<4x512xf32>, vector<64x512xf32> -> vector<64x512xf32>
    %c0_4 = arith.constant 0 : index
    %c0_5 = arith.constant 0 : index
    %4 = vector.load %arg4[%c0_4, %c0_5] : memref<64x1xf32, #tpu.memory_space<vmem>>, vector<64x1xf32>
    %5 = vector.broadcast %4 : vector<64x1xf32> to vector<64x512xf32>
    %6 = arith.mulf %3, %5 : vector<64x512xf32>
    %c0_6 = arith.constant 0 : index
    %c0_7 = arith.constant 0 : index
    %7 = vector.load %arg5[%c0_6, %c0_7] : memref<64x1xf32, #tpu.memory_space<vmem>>, vector<64x1xf32>
    %8 = vector.broadcast %7 : vector<64x1xf32> to vector<64x512xf32>
    %9 = arith.addf %6, %8 : vector<64x512xf32>
    %c0_8 = arith.constant 0 : index
    %10 = memref.load %arg6[%c0_8] : memref<1xf32, #tpu.memory_space<smem>>
    %cst_9 = arith.constant 0.000000e+00 : f32
    %11 = vector.broadcast %cst_9 : f32 to vector<64x512xf32>
    %12 = arith.cmpf oge, %9, %11 : vector<64x512xf32>
    %13 = vector.broadcast %10 : f32 to vector<64x512xf32>
    %14 = arith.mulf %13, %9 : vector<64x512xf32>
    %15 = arith.select %12, %9, %14 : vector<64x512xi1>, vector<64x512xf32>
    %c0_10 = arith.constant 0 : index
    %c0_11 = arith.constant 0 : index
    %c0_12 = arith.constant 0 : index
    %16 = vector.load %arg7[%c0_10, %c0_11, %c0_12] : memref<1x64x512xf32, #tpu.memory_space<vmem>>, vector<1x64x512xf32>
    %17 = vector.shape_cast %16 : vector<1x64x512xf32> to vector<64x512xf32>
    %18 = vector.shape_cast %15 : vector<64x512xf32> to vector<1x64x512xf32>
    tpu.vector_store %arg7[%c0_10, %c0_11, %c0_12], %18 {strides = array<i32>} : memref<1x64x512xf32, #tpu.memory_space<vmem>>, vector<1x64x512xf32>,
    return
  }
  func.func @transform_0(%arg0: i32, %arg1: i32) -> (i32, i32, i32) {
    %c0_i32 = arith.constant 0 : i32
    %c0_i32_0 = arith.constant 0 : i32
    return %arg0, %c0_i32, %arg1 : i32, i32, i32
  }
  func.func @transform_1(%arg0: i32, %arg1: i32) -> (i32, i32) {
    %c0_i32 = arith.constant 0 : i32
    %c0_i32_0 = arith.constant 0 : i32
    %c0_i32_1 = arith.constant 0 : i32
    return %c0_i32, %c0_i32_0 : i32, i32
  }
  func.func @transform_2(%arg0: i32, %arg1: i32) -> (i32, i32) {
    %c0_i32 = arith.constant 0 : i32
    %c0_i32_0 = arith.constant 0 : i32
    %c0_i32_1 = arith.constant 0 : i32
    return %c0_i32, %c0_i32_0 : i32, i32
  }
  func.func @transform_3(%arg0: i32, %arg1: i32) -> (i32, i32) {
    %c0_i32 = arith.constant 0 : i32
    %c0_i32_0 = arith.constant 0 : i32
    %c0_i32_1 = arith.constant 0 : i32
    return %c0_i32, %c0_i32_0 : i32, i32
  }
  func.func @transform_4(%arg0: i32, %arg1: i32) -> i32 {
    %c0_i32 = arith.constant 0 : i32
    %c0_i32_0 = arith.constant 0 : i32
    return %c0_i32 : i32
  }
  func.func @transform_5(%arg0: i32, %arg1: i32) -> (i32, i32, i32) {
    %c0_i32 = arith.constant 0 : i32
    %c0_i32_0 = arith.constant 0 : i32
    return %arg0, %c0_i32, %arg1 : i32, i32, i32
  }
}

</mosaic_0001>

<llo_original>
// kernel: tile.18
$region0: #{tile.18}
  #allocation0 [shape = 's32[1]{0}', space=sflag, size = 0x4, scoped, tag = 'scoped memory for tile.18']
  %s0 = inlined_call_operand.vmem [shape: f32[8], index: 0, kind: input, shape index: {}]
  %s1 = inlined_call_operand.vmem [shape: f32[8,8], index: 1, kind: output, shape index: {}]
  // Predicated region
  $region2: #{tile.18} parent=0 // pred_check
    _
  $region3: #{tile.18} parent=0 // pred_check_branch
    %3 = sbr.rel (0) target = $region5
  $region4: #{tile.18} parent=0 // pred_region
    _
  $region5: #{tile.18} parent=0 // pred_fallthru
    _
  %v4 = vld [vmem:[%s0] ss:$0 sm:$0xff]
  %5 = vst [vmem:[%s1] sm:$0xff] %v4

// kernel: tile.0
$region0: #{tile.0}
  %s0 = inlined_call_operand.vmem [shape: f32[8,8], index: 0, kind: input, shape index: {}]
  %s1 = inlined_call_operand.vmem [shape: f32[64,1], index: 1, kind: output, shape index: {}]
  %v2 = vld [vmem:[%s0] sm:$0xff]
  %vm3 = vcmask 7168
  %4 = vst.msk [vmem:[%s1] ss:$8 sm:$0xf] %vm3, %v2
  %5 = vst.msk [vmem:[%s1] ss:$8 sm:$0xf0] %vm3, %v2
  %v6 = vld [vmem:[%s0] sm:$0xff]
  %7 = vrot.lane.b32.xlu0 %v6, 127
  %v8 = vpop.permute.xlu0 %7
  %vm9 = vcmask 7168
  %s10 = scalar_lea.vmem %s1, 1
  %11 = vst.msk [vmem:[%s10] ss:$8 sm:$0xf] %vm9, %v8
  %s12 = scalar_lea.vmem %s1, 1
  %13 = vst.msk [vmem:[%s12] ss:$8 sm:$0xf0] %vm9, %v8
  %v14 = vld [vmem:[%s0] sm:$0xff]
  %15 = vrot.lane.b32.xlu0 %v14, 126
  %v16 = vpop.permute.xlu0 %15
  %vm17 = vcmask 7168
  %s18 = scalar_lea.vmem %s1, 2
  %19 = vst.msk [vmem:[%s18] ss:$8 sm:$0xf] %vm17, %v16
  %s20 = scalar_lea.vmem %s1, 2
  %21 = vst.msk [vmem:[%s20] ss:$8 sm:$0xf0] %vm17, %v16
  %v22 = vld [vmem:[%s0] sm:$0xff]
  %23 = vrot.lane.b32.xlu0 %v22, 125
  %v24 = vpop.permute.xlu0 %23
  %vm25 = vcmask 7168
  %s26 = scalar_lea.vmem %s1, 3
  %27 = vst.msk [vmem:[%s26] ss:$8 sm:$0xf] %vm25, %v24
  %s28 = scalar_lea.vmem %s1, 3
  %29 = vst.msk [vmem:[%s28] ss:$8 sm:$0xf0] %vm25, %v24
  %v30 = vld [vmem:[%s0] sm:$0xff]
  %31 = vrot.lane.b32.xlu0 %v30, 124
  %v32 = vpop.permute.xlu0 %31
  %vm33 = vcmask 7168
  %s34 = scalar_lea.vmem %s1, 4
  %35 = vst.msk [vmem:[%s34] ss:$8 sm:$0xf] %vm33, %v32
  %s36 = scalar_lea.vmem %s1, 4
  %37 = vst.msk [vmem:[%s36] ss:$8 sm:$0xf0] %vm33, %v32
  %v38 = vld [vmem:[%s0] sm:$0xff]
  %39 = vrot.lane.b32.xlu0 %v38, 123
  %v40 = vpop.permute.xlu0 %39
  %vm41 = vcmask 7168
  %s42 = scalar_lea.vmem %s1, 5
  %43 = vst.msk [vmem:[%s42] ss:$8 sm:$0xf] %vm41, %v40
  %s44 = scalar_lea.vmem %s1, 5
  %45 = vst.msk [vmem:[%s44] ss:$8 sm:$0xf0] %vm41, %v40
  %v46 = vld [vmem:[%s0] sm:$0xff]
  %47 = vrot.lane.b32.xlu0 %v46, 122
  %v48 = vpop.permute.xlu0 %47
  %vm49 = vcmask 7168
  %s50 = scalar_lea.vmem %s1, 6
  %51 = vst.msk [vmem:[%s50] ss:$8 sm:$0xf] %vm49, %v48
  %s52 = scalar_lea.vmem %s1, 6
  %53 = vst.msk [vmem:[%s52] ss:$8 sm:$0xf0] %vm49, %v48
  %v54 = vld [vmem:[%s0] sm:$0xff]
  %55 = vrot.lane.b32.xlu0 %v54, 121
  %v56 = vpop.permute.xlu0 %55
  %vm57 = vcmask 7168
  %s58 = scalar_lea.vmem %s1, 7
  %59 = vst.msk [vmem:[%s58] ss:$8 sm:$0xf] %vm57, %v56
  %s60 = scalar_lea.vmem %s1, 7
  %61 = vst.msk [vmem:[%s60] ss:$8 sm:$0xf0] %vm57, %v56

// kernel: upsampling_forward.2
$region0: #{upsampling_forward.2}
  #allocation0 [shape = 'u32[]', space=smem, size = 0x4, offset = 0x4, fixed_abs, tag = 'smem constant byte address 0x4 - core index']
  #allocation1 [shape = 'u32[144,128]{1,0:T(1,128)}', space=vmem, size = 0x12000, scoped, tag = 'internal scratch']
  %s0 = inlined_call_operand.vmem [shape: f32[2,4,512], index: 0, kind: input, shape index: {}]
  %s1 = inlined_call_operand.vmem [shape: f32[2,4,4], index: 1, kind: output, shape index: {0}]
  %s2 = inlined_call_operand.vmem [shape: f32[2,4,1], index: 2, kind: output, shape index: {1}]
  %3 = xla_tuple %s1, %s2
  %s4 = sld [smem:[#allocation0]]
  $region49: #{upsampling_forward.2} parent=0
    _
  %s6 = ssub.s32 1, %s4
  %s7 = scalar_select 0, %s6, %s4
  loop: start=0, step=1, limit=4
  $region2: #{upsampling_forward.2} parent=0 // loop_pre_header
    _
  $region3: #{upsampling_forward.2} parent=0 // loop_header
    %s9 = sphi 0, %s13
    %p10 = scmp.ge.s32.totalorder %s9, 4
    %s16 = sphi 0, %s28
    %s17 = sphi 0, %s24
    %s18 = sphi 0, %s16
    %s19 = sphi 0, %s17
    %s20 = sphi 0, %s18
    %s21 = sphi 0, %s19
    %s33 = sphi 0, %s35
    %s36 = sphi 0, %s33
    %s37 = sphi 0, %s36
    %s53 = sphi 0, %s37
    %s59 = sphi 0, %s61
    %s62 = sphi 0, %s59
    %s63 = sphi 0, %s62
    %s79 = sphi 0, %s63
    %s85 = sphi 0, %s87
    %s88 = sphi 0, %s85
    %s89 = sphi 0, %s88
    %s105 = sphi 0, %s89
  $region4: #{upsampling_forward.2} parent=0 // loop_header_branch
    %12 = sbr.rel (%p10) target = $region8
  $region5: #{upsampling_forward.2} parent=0 // loop_body
    %s14 = ssub.s32 %s9, 1
    %s15 = ssub.s32 %s9, 2
    %s22 = sadd.s32 1, %s17
    %p23 = scmp.ge.s32.totalorder %s22, 1
    %s24 = scalar_select %p23, 0, %s22
    %s25 = sadd.s32 1, %s16
    %s26 = scalar_select %p23, %s25, %s16
    %p27 = scmp.ge.s32.totalorder %s26, 2
    %s28 = scalar_select %p27, 0, %s26
    %s29 = ssub.s32 %s16, %s28
    %s30 = ssub.s32 %s17, %s24
    %s31 = sor.u32 %s29, %s30
    %p32 = scmp.eq.s32.totalorder %s31, 0
    %s34 = sadd.s32 %s33, 1
    %s35 = scalar_select %p32, %s33, %s34
    %p38 = pneg %p32
    %p39 = scmp.eq.s32.totalorder %s9, 1
    %p40 = por %p38, %p39
    %p41 = scmp.ne.s32.totalorder %s33, %s36
    %p42 = scmp.eq.s32.totalorder %s9, 0
    %p43 = por %p41, %p42
    %p44 = scmp.ne.s32.totalorder %s33, %s36
    %p45 = scmp.eq.s32.totalorder %s14, 1
    %p46 = por %p44, %p45
    %p47 = scmp.ne.s32.totalorder %s36, %s37
    %p48 = scmp.eq.s32.totalorder %s14, 0
    %p49 = por %p47, %p48
    %p50 = scmp.ne.s32.totalorder %s36, %s37
    %p51 = scmp.eq.s32.totalorder %s15, 1
    %p52 = por %p50, %p51
    %p54 = scmp.ne.s32.totalorder %s37, %s53
    %p55 = scmp.eq.s32.totalorder %s15, 0
    %p56 = por %p54, %p55
    %s57 = ssub.s32 %s16, %s28
    %p58 = scmp.eq.s32.totalorder %s57, 0
    %s60 = sadd.s32 %s59, 1
    %s61 = scalar_select %p58, %s59, %s60
    %p64 = pneg %p58
    %p65 = scmp.eq.s32.totalorder %s9, 1
    %p66 = por %p64, %p65
    %p67 = scmp.ne.s32.totalorder %s59, %s62
    %p68 = scmp.eq.s32.totalorder %s9, 0
    %p69 = por %p67, %p68
    %p70 = scmp.ne.s32.totalorder %s59, %s62
    %p71 = scmp.eq.s32.totalorder %s14, 1
    %p72 = por %p70, %p71
    %p73 = scmp.ne.s32.totalorder %s62, %s63
    %p74 = scmp.eq.s32.totalorder %s14, 0
    %p75 = por %p73, %p74
    %p76 = scmp.ne.s32.totalorder %s62, %s63
    %p77 = scmp.eq.s32.totalorder %s15, 1
    %p78 = por %p76, %p77
    %p80 = scmp.ne.s32.totalorder %s63, %s79
    %p81 = scmp.eq.s32.totalorder %s15, 0
    %p82 = por %p80, %p81
    %s83 = ssub.s32 %s16, %s28
    %p84 = scmp.eq.s32.totalorder %s83, 0
    %s86 = sadd.s32 %s85, 1
    %s87 = scalar_select %p84, %s85, %s86
    %p90 = pneg %p84
    %p91 = scmp.eq.s32.totalorder %s9, 1
    %p92 = por %p90, %p91
    %p93 = scmp.ne.s32.totalorder %s85, %s88
    %p94 = scmp.eq.s32.totalorder %s9, 0
    %p95 = por %p93, %p94
    %p96 = scmp.ne.s32.totalorder %s85, %s88
    %p97 = scmp.eq.s32.totalorder %s14, 1
    %p98 = por %p96, %p97
    %p99 = scmp.ne.s32.totalorder %s88, %s89
    %p100 = scmp.eq.s32.totalorder %s14, 0
    %p101 = por %p99, %p100
    %p102 = scmp.ne.s32.totalorder %s88, %s89
    %p103 = scmp.eq.s32.totalorder %s15, 1
    %p104 = por %p102, %p103
    %p106 = scmp.ne.s32.totalorder %s89, %s105
    %p107 = scmp.eq.s32.totalorder %s15, 0
    %p108 = por %p106, %p107
    %p109 = scmp.le.s32.totalorder 1, %s9
    %p110 = scmp.lt.s32.totalorder %s9, 3
    %p111 = pnand %p109, %p110
    %p112 = pneg %p111
    // Predicated region
    $region9: #{upsampling_forward.2} parent=5 // pred_check
      _
    $region10: #{upsampling_forward.2} parent=5 // pred_check_branch
      %114 = sbr.rel (%p111) target = $region12
    $region11: #{upsampling_forward.2} parent=5 // pred_region
      %s115 = ssub.s32 %s9, 1
    $region12: #{upsampling_forward.2} parent=5 // pred_fallthru
      _
    %p116 = scmp.lt.s32.totalorder %s9, 2
    // Predicated region
    $region13: #{upsampling_forward.2} parent=5 // pred_check
      %p117 = pneg %p116
    $region14: #{upsampling_forward.2} parent=5 // pred_check_branch
      %119 = sbr.rel (%p117) target = $region16
    $region15: #{upsampling_forward.2} parent=5 // pred_region
      // Predicated region
      $region17: #{upsampling_forward.2} parent=15 // pred_check
        %p120 = pneg %p43
      $region18: #{upsampling_forward.2} parent=15 // pred_check_branch
        %122 = sbr.rel (%p120) target = $region20
      $region19: #{upsampling_forward.2} parent=15 // pred_region
        %s123 = smul.u32 4, %s17
        %p124 = scmp.lt.s32.totalorder %s16, 1
        %s125 = scalar_select %p124, %s16, 1
        %p126 = scmp.lt.s32.totalorder %s123, 3
        %s127 = scalar_select %p126, %s123, 3
        %s128 = smul.addr %s125, 4
        %s129 = sadd.s32 %s127, %s128
        %s130 = smul.addr %s129, 4
        %s131 = scalar_lea.vmem %s0, %s130
        %s132 = smul.u32 4, %s17
      $region20: #{upsampling_forward.2} parent=15 // pred_fallthru
        _
    $region16: #{upsampling_forward.2} parent=5 // pred_fallthru
      _
    %p133 = scmp.le.s32.totalorder 1, %s9
    %p134 = scmp.lt.s32.totalorder %s9, 3
    %p135 = pnand %p133, %p134
    %p136 = pneg %p135
    // Predicated region
    $region21: #{upsampling_forward.2} parent=5 // pred_check
      _
    $region22: #{upsampling_forward.2} parent=5 // pred_check_branch
      %138 = sbr.rel (%p135) target = $region24
    $region23: #{upsampling_forward.2} parent=5 // pred_region
      %s139 = ssub.s32 %s9, 1
      %s140 = smul.u32 4, %s19
      %p141 = scmp.lt.s32.totalorder %s18, 1
      %s142 = scalar_select %p141, %s18, 1
      %p143 = scmp.lt.s32.totalorder %s140, 3
      %s144 = scalar_select %p143, %s140, 3
      %s145 = smul.addr %s142, 4
      %s146 = sadd.s32 %s144, %s145
      %s147 = smul.addr %s146, 4
      %s148 = scalar_lea.vmem %s0, %s147
      %p149 = pneg %p49
      %p150 = pneg %p46
      %p151 = pneg %p75
      %p152 = pneg %p72
      %p153 = scmp.lt.s32.totalorder %s18, 1
      %s154 = scalar_select %p153, %s18, 1
      %s155 = smul.addr %s154, 4
      %s156 = scalar_lea.vmem %s1, %s155
      %p157 = pneg %p101
      %p158 = pneg %p98
      %p159 = scmp.lt.s32.totalorder %s18, 1
      %s160 = scalar_select %p159, %s18, 1
      %s161 = smul.addr %s160, 4
      %s162 = scalar_lea.vmem %s2, %s161
      %s163 = smul.u32 4, %s19
      %p164 = scmp.lt.s32.totalorder %s18, 1
      %s165 = scalar_select %p164, %s18, 1
      %p166 = scmp.lt.s32.totalorder %s163, 3
      %s167 = scalar_select %p166, %s163, 3
      %s168 = smul.addr %s165, 4
      %s169 = sadd.s32 %s167, %s168
      %s170 = smul.addr %s169, 4
      %s171 = scalar_lea.vmem %s0, %s170
      %s172 = smul.u32 4, %s19
      %p173 = scmp.lt.s32.totalorder %s18, 1
      %s174 = scalar_select %p173, %s18, 1
      %s175 = smul.addr %s174, 4
      %s176 = scalar_lea.vmem %s1, %s175
      %p177 = scmp.lt.s32.totalorder %s18, 1
      %s178 = scalar_select %p177, %s18, 1
      %s179 = smul.addr %s178, 4
      %s180 = scalar_lea.vmem %s2, %s179
      %p181 = scmp.eq.s32.totalorder %s19, 0
      // Predicated region
      $region25: #{upsampling_forward.2} parent=23 // pred_check
        %p182 = pneg %p181
      $region26: #{upsampling_forward.2} parent=23 // pred_check_branch
        %184 = sbr.rel (%p182) target = $region28
      $region27: #{upsampling_forward.2} parent=23 // pred_region
        %vm185 = vcmask 27648
        %186 = vst.msk [vmem:[%s176] sm:$0xf] %vm185, 0.0
        %vm187 = vcmask 3072
        %188 = vst.msk [vmem:[%s180] sm:$0xf] %vm187, 0.0
      $region28: #{upsampling_forward.2} parent=23 // pred_fallthru
        _
      %v189 = vld [vmem:[%s171] sm:$0xff]
      %v190 = vld [vmem:[%s171 + $0x8] sm:$0xff]
      %v191 = vld [vmem:[%s176] sm:$0xf]
      %v194 = vcombine.high %v189, %v189
      %v195 = vcombine.high %v190, %v190
      %198 = vmatprep.subr.mxu0 %v194
      %199 = vmatpush1.xpose.msra.mxu0 %v189
      %200 = vmatprep.subr.mxu0 0.0
      %201 = vmatpush1.xpose.msra.mxu0 0.0
      %202 = vmatprep.subr.mxu0 0.0
      %203 = vmatpush1.xpose.msra.mxu0 0.0
      %204 = vmatprep.subr.mxu0 0.0
      %205 = vmatpush1.xpose.msra.mxu0 0.0
      %206 = vmatprep.subr.mxu0 0.0
      %207 = vmatpush1.xpose.msra.mxu0 0.0
      %208 = vmatprep.subr.mxu0 0.0
      %209 = vmatpush1.xpose.msra.mxu0 0.0
      %210 = vmatprep.subr.mxu0 0.0
      %211 = vmatpush1.xpose.msra.mxu0 0.0
      %212 = vmatprep.subr.mxu0 0.0
      %213 = vmatpush1.xpose.msra.mxu0 0.0
      %214 = vmatprep.subr.mxu0 0.0
      %215 = vmatpush1.xpose.msra.mxu0 0.0
      %216 = vmatprep.subr.mxu0 0.0
      %217 = vmatpush1.xpose.msra.mxu0 0.0
      %218 = vmatprep.subr.mxu0 0.0
      %219 = vmatpush1.xpose.msra.mxu0 0.0
      %220 = vmatprep.subr.mxu0 0.0
      %221 = vmatpush1.xpose.msra.mxu0 0.0
      %222 = vmatprep.subr.mxu0 0.0
      %223 = vmatpush1.xpose.msra.mxu0 0.0
      %224 = vmatprep.subr.mxu0 0.0
      %225 = vmatpush1.xpose.msra.mxu0 0.0
      %226 = vmatprep.subr.mxu0 0.0
      %227 = vmatpush1.xpose.msra.mxu0 0.0
      %228 = vmatprep.subr.mxu0 0.0
      %229 = vmatpush1.xpose.msra.mxu0 0.0
      %230 = vmatprep.subr.mxu0 0.0
      %231 = vmatpush1.xpose.msra.mxu0 0.0
      %232 = vmatprep.subr.mxu0 0.0
      %233 = vmatpush1.xpose.msra.mxu0 0.0
      %234 = vmatprep.subr.mxu0 0.0
      %235 = vmatpush1.xpose.msra.mxu0 0.0
      %236 = vmatprep.subr.mxu0 0.0
      %237 = vmatpush1.xpose.msra.mxu0 0.0
      %238 = vmatprep.subr.mxu0 0.0
      %239 = vmatpush1.xpose.msra.mxu0 0.0
      %240 = vmatprep.subr.mxu0 0.0
      %241 = vmatpush1.xpose.msra.mxu0 0.0
      %242 = vmatprep.subr.mxu0 0.0
      %243 = vmatpush1.xpose.msra.mxu0 0.0
      %244 = vmatprep.subr.mxu0 0.0
      %245 = vmatpush1.xpose.msra.mxu0 0.0
      %246 = vmatprep.subr.mxu0 0.0
      %247 = vmatpush1.xpose.msra.mxu0 0.0
      %248 = vmatprep.subr.mxu0 0.0
      %249 = vmatpush1.xpose.msra.mxu0 0.0
      %250 = vmatprep.subr.mxu0 0.0
      %251 = vmatpush1.xpose.msra.mxu0 0.0
      %252 = vmatprep.subr.mxu0 0.0
      %253 = vmatpush1.xpose.msra.mxu0 0.0
      %254 = vmatprep.subr.mxu0 0.0
      %255 = vmatpush1.xpose.msra.mxu0 0.0
      %256 = vmatprep.subr.mxu0 0.0
      %257 = vmatpush1.xpose.msra.mxu0 0.0
      %258 = vmatprep.subr.mxu0 0.0
      %259 = vmatpush1.xpose.msra.mxu0 0.0
      %260 = vmatprep.subr.mxu0 0.0
      %261 = vmatpush1.xpose.msra.mxu0 0.0
      %262 = vmatprep.mubr.f32.mxu0 %v194
      %263 = vmatmul.mubr.f32.gmra.mrb[0].mxu0 %v189
      %v264 = vpop.f32.mrb[0].mxu0
      %v265 = vadd.f32 0.0, %v264
      %v266 = vpop.f32.mrb[0].mxu0
      %267 = vdwg.mxu0
      %268 = vmatprep.subr.mxu0 %v195
      %269 = vmatpush1.xpose.msra.mxu0 %v190
      %270 = vmatprep.subr.mxu0 0.0
      %271 = vmatpush1.xpose.msra.mxu0 0.0
      %272 = vmatprep.subr.mxu0 0.0
      %273 = vmatpush1.xpose.msra.mxu0 0.0
      %274 = vmatprep.subr.mxu0 0.0
      %275 = vmatpush1.xpose.msra.mxu0 0.0
      %276 = vmatprep.subr.mxu0 0.0
      %277 = vmatpush1.xpose.msra.mxu0 0.0
      %278 = vmatprep.subr.mxu0 0.0
      %279 = vmatpush1.xpose.msra.mxu0 0.0
      %280 = vmatprep.subr.mxu0 0.0
      %281 = vmatpush1.xpose.msra.mxu0 0.0
      %282 = vmatprep.subr.mxu0 0.0
      %283 = vmatpush1.xpose.msra.mxu0 0.0
      %284 = vmatprep.subr.mxu0 0.0
      %285 = vmatpush1.xpose.msra.mxu0 0.0
      %286 = vmatprep.subr.mxu0 0.0
      %287 = vmatpush1.xpose.msra.mxu0 0.0
      %288 = vmatprep.subr.mxu0 0.0
      %289 = vmatpush1.xpose.msra.mxu0 0.0
      %290 = vmatprep.subr.mxu0 0.0
      %291 = vmatpush1.xpose.msra.mxu0 0.0
      %292 = vmatprep.subr.mxu0 0.0
      %293 = vmatpush1.xpose.msra.mxu0 0.0
      %294 = vmatprep.subr.mxu0 0.0
      %295 = vmatpush1.xpose.msra.mxu0 0.0
      %296 = vmatprep.subr.mxu0 0.0
      %297 = vmatpush1.xpose.msra.mxu0 0.0
      %298 = vmatprep.subr.mxu0 0.0
      %299 = vmatpush1.xpose.msra.mxu0 0.0
      %300 = vmatprep.subr.mxu0 0.0
      %301 = vmatpush1.xpose.msra.mxu0 0.0
      %302 = vmatprep.subr.mxu0 0.0
      %303 = vmatpush1.xpose.msra.mxu0 0.0
      %304 = vmatprep.subr.mxu0 0.0
      %305 = vmatpush1.xpose.msra.mxu0 0.0
      %306 = vmatprep.subr.mxu0 0.0
      %307 = vmatpush1.xpose.msra.mxu0 0.0
      %308 = vmatprep.subr.mxu0 0.0
      %309 = vmatpush1.xpose.msra.mxu0 0.0
      %310 = vmatprep.subr.mxu0 0.0
      %311 = vmatpush1.xpose.msra.mxu0 0.0
      %312 = vmatprep.subr.mxu0 0.0
      %313 = vmatpush1.xpose.msra.mxu0 0.0
      %314 = vmatprep.subr.mxu0 0.0
      %315 = vmatpush1.xpose.msra.mxu0 0.0
      %316 = vmatprep.subr.mxu0 0.0
      %317 = vmatpush1.xpose.msra.mxu0 0.0
      %318 = vmatprep.subr.mxu0 0.0
      %319 = vmatpush1.xpose.msra.mxu0 0.0
      %320 = vmatprep.subr.mxu0 0.0
      %321 = vmatpush1.xpose.msra.mxu0 0.0
      %322 = vmatprep.subr.mxu0 0.0
      %323 = vmatpush1.xpose.msra.mxu0 0.0
      %324 = vmatprep.subr.mxu0 0.0
      %325 = vmatpush1.xpose.msra.mxu0 0.0
      %326 = vmatprep.subr.mxu0 0.0
      %327 = vmatpush1.xpose.msra.mxu0 0.0
      %328 = vmatprep.subr.mxu0 0.0
      %329 = vmatpush1.xpose.msra.mxu0 0.0
      %330 = vmatprep.subr.mxu0 0.0
      %331 = vmatpush1.xpose.msra.mxu0 0.0
      %332 = vmatprep.mubr.f32.mxu0 %v195
      %333 = vmatmul.mubr.f32.gmra.mrb[0].mxu0 %v190
      %v334 = vpop.f32.mrb[0].mxu0
      %v335 = vadd.f32 %v265, %v334
      %v336 = vpop.f32.mrb[0].mxu0
      %337 = vdwg.mxu0
      %v338 = vadd.f32 %v191, %v335
      %vm339 = vcmask 27648
      %340 = vst.msk [vmem:[%s176] sm:$0xf] %vm339, %v338
      %v341 = vld [vmem:[%s180] sm:$0xf]
      %vm342 = vcmask 1043456
      %v343 = vsel %vm342, %v189, 0.0
      %v344 = vsel %vm342, %v194, 0.0
      %v345 = vadd.f32 %v343, %v344
      %v346 = vsel %vm342, %v190, 0.0
      %v347 = vadd.f32 %v345, %v346
      %v348 = vsel %vm342, %v195, 0.0
      %v349 = vadd.f32 %v347, %v348
      %350 = vadd.xlane.f32.xlu0 %v349
      %v351 = vpop.xlane.xlu0 %350
      %v352 = vadd.f32 %v341, %v351
      %vm353 = vcmask 3072
      %354 = vst.msk [vmem:[%s180] sm:$0xf] %vm353, %v352
      %p355 = scmp.lt.s32.totalorder %s18, 1
      %s356 = scalar_select %p355, %s18, 1
      %s357 = smul.addr %s356, 4
      %s358 = scalar_lea.vmem %s1, %s357
      %p359 = scmp.lt.s32.totalorder %s18, 1
      %s360 = scalar_select %p359, %s18, 1
      %s361 = smul.addr %s360, 4
      %s362 = scalar_lea.vmem %s2, %s361
      // Predicated region
      $region29: #{upsampling_forward.2} parent=23 // pred_check
        %p363 = pneg %p72
      $region30: #{upsampling_forward.2} parent=23 // pred_check_branch
        %365 = sbr.rel (%p363) target = $region32
      $region31: #{upsampling_forward.2} parent=23 // pred_region
        _
      $region32: #{upsampling_forward.2} parent=23 // pred_fallthru
        _
      // Predicated region
      $region33: #{upsampling_forward.2} parent=23 // pred_check
        %p366 = pneg %p98
      $region34: #{upsampling_forward.2} parent=23 // pred_check_branch
        %368 = sbr.rel (%p366) target = $region36
      $region35: #{upsampling_forward.2} parent=23 // pred_region
        _
      $region36: #{upsampling_forward.2} parent=23 // pred_fallthru
        _
    $region24: #{upsampling_forward.2} parent=5 // pred_fallthru
      _
    %p369 = scmp.le.s32.totalorder 2, %s9
    // Predicated region
    $region37: #{upsampling_forward.2} parent=5 // pred_check
      %p370 = pneg %p369
    $region38: #{upsampling_forward.2} parent=5 // pred_check_branch
      %372 = sbr.rel (%p370) target = $region40
    $region39: #{upsampling_forward.2} parent=5 // pred_region
      %s373 = ssub.s32 %s9, 2
      // Predicated region
      $region41: #{upsampling_forward.2} parent=39 // pred_check
        %p374 = pneg %p78
      $region42: #{upsampling_forward.2} parent=39 // pred_check_branch
        %376 = sbr.rel (%p374) target = $region44
      $region43: #{upsampling_forward.2} parent=39 // pred_region
        %p377 = scmp.lt.s32.totalorder %s20, 1
        %s378 = scalar_select %p377, %s20, 1
        %s379 = smul.addr %s378, 4
        %s380 = scalar_lea.vmem %s1, %s379
      $region44: #{upsampling_forward.2} parent=39 // pred_fallthru
        _
      // Predicated region
      $region45: #{upsampling_forward.2} parent=39 // pred_check
        %p381 = pneg %p104
      $region46: #{upsampling_forward.2} parent=39 // pred_check_branch
        %383 = sbr.rel (%p381) target = $region48
      $region47: #{upsampling_forward.2} parent=39 // pred_region
        %p384 = scmp.lt.s32.totalorder %s20, 1
        %s385 = scalar_select %p384, %s20, 1
        %s386 = smul.addr %s385, 4
        %s387 = scalar_lea.vmem %s2, %s386
      $region48: #{upsampling_forward.2} parent=39 // pred_fallthru
        _
    $region40: #{upsampling_forward.2} parent=5 // pred_fallthru
      _
  $region6: #{upsampling_forward.2} parent=0 // loop_footer
    %s13 = sadd.s32 1, %s9
  $region7: #{upsampling_forward.2} parent=0 // loop_footer_branch
    %8 = sbr.rel target = $region3
  $region8: #{upsampling_forward.2} parent=0 // loop_exit
    _

// kernel: upsampling_forward.3
$region0: #{upsampling_forward.3}
  #allocation0 [shape = 'u32[]', space=smem, size = 0x4, offset = 0x4, fixed_abs, tag = 'smem constant byte address 0x4 - core index']
  #allocation1 [shape = 'u32[144,128]{1,0:T(1,128)}', space=vmem, size = 0x12000, scoped, tag = 'internal scratch']
  #allocation2 [shape = 'f32[1]{0:T(128)S(6)}', space=smem, size = 0x200, scoped, tag = 'scoped memory for upsampling_forward.3']
  %s0 = inlined_call_operand.vmem [shape: f32[2,4,512], index: 0, kind: input, shape index: {}]
  %s1 = inlined_call_operand.vmem [shape: f32[64,4], index: 1, kind: input, shape index: {}]
  %s2 = inlined_call_operand.vmem [shape: f32[64,1], index: 2, kind: input, shape index: {}]
  %s3 = inlined_call_operand.vmem [shape: f32[64,1], index: 3, kind: input, shape index: {}]
  %s4 = inlined_call_operand.<no memory space> [shape: f32[1], index: 4, kind: input, shape index: {}]
  %s5 = inlined_call_operand.vmem [shape: f32[2,64,512], index: 5, kind: output, shape index: {}]
  %s6 = sld [smem:[#allocation0]]
  $region53: #{upsampling_forward.3} parent=0
    _
  %s8 = ssub.s32 1, %s6
  %s9 = scalar_select 0, %s8, %s6
  %10 = sst [smem:[#allocation2]] %s4
  loop: start=0, step=1, limit=4
  $region2: #{upsampling_forward.3} parent=0 // loop_pre_header
    _
  $region3: #{upsampling_forward.3} parent=0 // loop_header
    %s12 = sphi 0, %s16
    %p13 = scmp.ge.s32.totalorder %s12, 4
    %s19 = sphi 0, %s31
    %s20 = sphi 0, %s27
    %s21 = sphi 0, %s19
    %s22 = sphi 0, %s20
    %s23 = sphi 0, %s21
    %s24 = sphi 0, %s22
    %s36 = sphi 0, %s38
    %s39 = sphi 0, %s36
    %s40 = sphi 0, %s39
    %s56 = sphi 0, %s40
    %s60 = sphi 0, %s60
    %s62 = sphi 0, %s60
    %s63 = sphi 0, %s62
    %s77 = sphi 0, %s63
    %s81 = sphi 0, %s81
    %s83 = sphi 0, %s81
    %s84 = sphi 0, %s83
    %s98 = sphi 0, %s84
    %s102 = sphi 0, %s102
    %s104 = sphi 0, %s102
    %s105 = sphi 0, %s104
    %s119 = sphi 0, %s105
    %s123 = sphi 0, %s123
    %s125 = sphi 0, %s123
    %s126 = sphi 0, %s125
    %s140 = sphi 0, %s126
    %s148 = sphi 0, %s150
    %s151 = sphi 0, %s148
    %s152 = sphi 0, %s151
    %s168 = sphi 0, %s152
  $region4: #{upsampling_forward.3} parent=0 // loop_header_branch
    %15 = sbr.rel (%p13) target = $region8
  $region5: #{upsampling_forward.3} parent=0 // loop_body
    %s17 = ssub.s32 %s12, 1
    %s18 = ssub.s32 %s12, 2
    %s25 = sadd.s32 1, %s20
    %p26 = scmp.ge.s32.totalorder %s25, 1
    %s27 = scalar_select %p26, 0, %s25
    %s28 = sadd.s32 1, %s19
    %s29 = scalar_select %p26, %s28, %s19
    %p30 = scmp.ge.s32.totalorder %s29, 2
    %s31 = scalar_select %p30, 0, %s29
    %s32 = ssub.s32 %s19, %s31
    %s33 = ssub.s32 %s20, %s27
    %s34 = sor.u32 %s32, %s33
    %p35 = scmp.eq.s32.totalorder %s34, 0
    %s37 = sadd.s32 %s36, 1
    %s38 = scalar_select %p35, %s36, %s37
    %p41 = pneg %p35
    %p42 = scmp.eq.s32.totalorder %s12, 1
    %p43 = por %p41, %p42
    %p44 = scmp.ne.s32.totalorder %s36, %s39
    %p45 = scmp.eq.s32.totalorder %s12, 0
    %p46 = por %p44, %p45
    %p47 = scmp.ne.s32.totalorder %s36, %s39
    %p48 = scmp.eq.s32.totalorder %s17, 1
    %p49 = por %p47, %p48
    %p50 = scmp.ne.s32.totalorder %s39, %s40
    %p51 = scmp.eq.s32.totalorder %s17, 0
    %p52 = por %p50, %p51
    %p53 = scmp.ne.s32.totalorder %s39, %s40
    %p54 = scmp.eq.s32.totalorder %s18, 1
    %p55 = por %p53, %p54
    %p57 = scmp.ne.s32.totalorder %s40, %s56
    %p58 = scmp.eq.s32.totalorder %s18, 0
    %p59 = por %p57, %p58
    %s61 = sadd.s32 %s60, 1
    %p64 = scmp.eq.s32.totalorder %s12, 1
    %p65 = scmp.ne.s32.totalorder %s60, %s62
    %p66 = scmp.eq.s32.totalorder %s12, 0
    %p67 = por %p65, %p66
    %p68 = scmp.ne.s32.totalorder %s60, %s62
    %p69 = scmp.eq.s32.totalorder %s17, 1
    %p70 = por %p68, %p69
    %p71 = scmp.ne.s32.totalorder %s62, %s63
    %p72 = scmp.eq.s32.totalorder %s17, 0
    %p73 = por %p71, %p72
    %p74 = scmp.ne.s32.totalorder %s62, %s63
    %p75 = scmp.eq.s32.totalorder %s18, 1
    %p76 = por %p74, %p75
    %p78 = scmp.ne.s32.totalorder %s63, %s77
    %p79 = scmp.eq.s32.totalorder %s18, 0
    %p80 = por %p78, %p79
    %s82 = sadd.s32 %s81, 1
    %p85 = scmp.eq.s32.totalorder %s12, 1
    %p86 = scmp.ne.s32.totalorder %s81, %s83
    %p87 = scmp.eq.s32.totalorder %s12, 0
    %p88 = por %p86, %p87
    %p89 = scmp.ne.s32.totalorder %s81, %s83
    %p90 = scmp.eq.s32.totalorder %s17, 1
    %p91 = por %p89, %p90
    %p92 = scmp.ne.s32.totalorder %s83, %s84
    %p93 = scmp.eq.s32.totalorder %s17, 0
    %p94 = por %p92, %p93
    %p95 = scmp.ne.s32.totalorder %s83, %s84
    %p96 = scmp.eq.s32.totalorder %s18, 1
    %p97 = por %p95, %p96
    %p99 = scmp.ne.s32.totalorder %s84, %s98
    %p100 = scmp.eq.s32.totalorder %s18, 0
    %p101 = por %p99, %p100
    %s103 = sadd.s32 %s102, 1
    %p106 = scmp.eq.s32.totalorder %s12, 1
    %p107 = scmp.ne.s32.totalorder %s102, %s104
    %p108 = scmp.eq.s32.totalorder %s12, 0
    %p109 = por %p107, %p108
    %p110 = scmp.ne.s32.totalorder %s102, %s104
    %p111 = scmp.eq.s32.totalorder %s17, 1
    %p112 = por %p110, %p111
    %p113 = scmp.ne.s32.totalorder %s104, %s105
    %p114 = scmp.eq.s32.totalorder %s17, 0
    %p115 = por %p113, %p114
    %p116 = scmp.ne.s32.totalorder %s104, %s105
    %p117 = scmp.eq.s32.totalorder %s18, 1
    %p118 = por %p116, %p117
    %p120 = scmp.ne.s32.totalorder %s105, %s119
    %p121 = scmp.eq.s32.totalorder %s18, 0
    %p122 = por %p120, %p121
    %s124 = sadd.s32 %s123, 1
    %p127 = scmp.eq.s32.totalorder %s12, 1
    %p128 = scmp.ne.s32.totalorder %s123, %s125
    %p129 = scmp.eq.s32.totalorder %s12, 0
    %p130 = por %p128, %p129
    %p131 = scmp.ne.s32.totalorder %s123, %s125
    %p132 = scmp.eq.s32.totalorder %s17, 1
    %p133 = por %p131, %p132
    %p134 = scmp.ne.s32.totalorder %s125, %s126
    %p135 = scmp.eq.s32.totalorder %s17, 0
    %p136 = por %p134, %p135
    %p137 = scmp.ne.s32.totalorder %s125, %s126
    %p138 = scmp.eq.s32.totalorder %s18, 1
    %p139 = por %p137, %p138
    %p141 = scmp.ne.s32.totalorder %s126, %s140
    %p142 = scmp.eq.s32.totalorder %s18, 0
    %p143 = por %p141, %p142
    %s144 = ssub.s32 %s19, %s31
    %s145 = ssub.s32 %s20, %s27
    %s146 = sor.u32 %s144, %s145
    %p147 = scmp.eq.s32.totalorder %s146, 0
    %s149 = sadd.s32 %s148, 1
    %s150 = scalar_select %p147, %s148, %s149
    %p153 = pneg %p147
    %p154 = scmp.eq.s32.totalorder %s12, 1
    %p155 = por %p153, %p154
    %p156 = scmp.ne.s32.totalorder %s148, %s151
    %p157 = scmp.eq.s32.totalorder %s12, 0
    %p158 = por %p156, %p157
    %p159 = scmp.ne.s32.totalorder %s148, %s151
    %p160 = scmp.eq.s32.totalorder %s17, 1
    %p161 = por %p159, %p160
    %p162 = scmp.ne.s32.totalorder %s151, %s152
    %p163 = scmp.eq.s32.totalorder %s17, 0
    %p164 = por %p162, %p163
    %p165 = scmp.ne.s32.totalorder %s151, %s152
    %p166 = scmp.eq.s32.totalorder %s18, 1
    %p167 = por %p165, %p166
    %p169 = scmp.ne.s32.totalorder %s152, %s168
    %p170 = scmp.eq.s32.totalorder %s18, 0
    %p171 = por %p169, %p170
    %p172 = scmp.le.s32.totalorder 1, %s12
    %p173 = scmp.lt.s32.totalorder %s12, 3
    %p174 = pnand %p172, %p173
    %p175 = pneg %p174
    // Predicated region
    $region9: #{upsampling_forward.3} parent=5 // pred_check
      _
    $region10: #{upsampling_forward.3} parent=5 // pred_check_branch
      %177 = sbr.rel (%p174) target = $region12
    $region11: #{upsampling_forward.3} parent=5 // pred_region
      %s178 = ssub.s32 %s12, 1
      // Predicated region
      $region13: #{upsampling_forward.3} parent=11 // pred_check
        %p179 = pneg %p73
      $region14: #{upsampling_forward.3} parent=11 // pred_check_branch
        %181 = sbr.rel (%p179) target = $region16
      $region15: #{upsampling_forward.3} parent=11 // pred_region
        _
      $region16: #{upsampling_forward.3} parent=11 // pred_fallthru
        _
      // Predicated region
      $region17: #{upsampling_forward.3} parent=11 // pred_check
        %p182 = pneg %p94
      $region18: #{upsampling_forward.3} parent=11 // pred_check_branch
        %184 = sbr.rel (%p182) target = $region20
      $region19: #{upsampling_forward.3} parent=11 // pred_region
        _
      $region20: #{upsampling_forward.3} parent=11 // pred_fallthru
        _
      // Predicated region
      $region21: #{upsampling_forward.3} parent=11 // pred_check
        %p185 = pneg %p115
      $region22: #{upsampling_forward.3} parent=11 // pred_check_branch
        %187 = sbr.rel (%p185) target = $region24
      $region23: #{upsampling_forward.3} parent=11 // pred_region
        _
      $region24: #{upsampling_forward.3} parent=11 // pred_fallthru
        _
      // Predicated region
      $region25: #{upsampling_forward.3} parent=11 // pred_check
        %p188 = pneg %p136
      $region26: #{upsampling_forward.3} parent=11 // pred_check_branch
        %190 = sbr.rel (%p188) target = $region28
      $region27: #{upsampling_forward.3} parent=11 // pred_region
        _
      $region28: #{upsampling_forward.3} parent=11 // pred_fallthru
        _
    $region12: #{upsampling_forward.3} parent=5 // pred_fallthru
      _
    %p191 = scmp.lt.s32.totalorder %s12, 2
    // Predicated region
    $region29: #{upsampling_forward.3} parent=5 // pred_check
      %p192 = pneg %p191
    $region30: #{upsampling_forward.3} parent=5 // pred_check_branch
      %194 = sbr.rel (%p192) target = $region32
    $region31: #{upsampling_forward.3} parent=5 // pred_region
      // Predicated region
      $region33: #{upsampling_forward.3} parent=31 // pred_check
        %p195 = pneg %p46
      $region34: #{upsampling_forward.3} parent=31 // pred_check_branch
        %197 = sbr.rel (%p195) target = $region36
      $region35: #{upsampling_forward.3} parent=31 // pred_region
        %s198 = smul.u32 4, %s20
        %p199 = scmp.lt.s32.totalorder %s19, 1
        %s200 = scalar_select %p199, %s19, 1
        %p201 = scmp.lt.s32.totalorder %s198, 3
        %s202 = scalar_select %p201, %s198, 3
        %s203 = smul.addr %s200, 4
        %s204 = sadd.s32 %s202, %s203
        %s205 = smul.addr %s204, 4
        %s206 = scalar_lea.vmem %s0, %s205
        %s207 = smul.u32 4, %s20
      $region36: #{upsampling_forward.3} parent=31 // pred_fallthru
        _
    $region32: #{upsampling_forward.3} parent=5 // pred_fallthru
      _
    %p208 = scmp.le.s32.totalorder 1, %s12
    %p209 = scmp.lt.s32.totalorder %s12, 3
    %p210 = pnand %p208, %p209
    %p211 = pneg %p210
    // Predicated region
    $region37: #{upsampling_forward.3} parent=5 // pred_check
      _
    $region38: #{upsampling_forward.3} parent=5 // pred_check_branch
      %213 = sbr.rel (%p210) target = $region40
    $region39: #{upsampling_forward.3} parent=5 // pred_region
      %s214 = ssub.s32 %s12, 1
      %s215 = smul.u32 4, %s22
      %p216 = scmp.lt.s32.totalorder %s21, 1
      %s217 = scalar_select %p216, %s21, 1
      %p218 = scmp.lt.s32.totalorder %s215, 3
      %s219 = scalar_select %p218, %s215, 3
      %s220 = smul.addr %s217, 4
      %s221 = sadd.s32 %s219, %s220
      %s222 = smul.addr %s221, 4
      %s223 = scalar_lea.vmem %s0, %s222
      %p224 = pneg %p52
      %p225 = pneg %p49
      %p226 = pneg %p73
      %p227 = pneg %p70
      %p228 = pneg %p94
      %p229 = pneg %p91
      %p230 = pneg %p115
      %p231 = pneg %p112
      %p232 = pneg %p136
      %p233 = pneg %p133
      %p234 = pneg %p164
      %p235 = pneg %p161
      %s236 = smul.u32 4, %s22
      %p237 = scmp.lt.s32.totalorder %s21, 1
      %s238 = scalar_select %p237, %s21, 1
      %p239 = scmp.lt.s32.totalorder %s236, 3
      %s240 = scalar_select %p239, %s236, 3
      %s241 = smul.addr %s238, 32
      %s242 = sadd.s32 %s240, %s241
      %s243 = smul.addr %s242, 8
      %s244 = scalar_lea.vmem %s5, %s243
      %s245 = smul.u32 4, %s22
      %p246 = scmp.lt.s32.totalorder %s21, 1
      %s247 = scalar_select %p246, %s21, 1
      %p248 = scmp.lt.s32.totalorder %s245, 3
      %s249 = scalar_select %p248, %s245, 3
      %s250 = smul.addr %s247, 4
      %s251 = sadd.s32 %s249, %s250
      %s252 = smul.addr %s251, 4
      %s253 = scalar_lea.vmem %s0, %s252
      %s254 = smul.u32 4, %s22
      %s255 = smul.u32 4, %s22
      %p256 = scmp.lt.s32.totalorder %s21, 1
      %s257 = scalar_select %p256, %s21, 1
      %p258 = scmp.lt.s32.totalorder %s255, 3
      %s259 = scalar_select %p258, %s255, 3
      %s260 = smul.addr %s257, 32
      %s261 = sadd.s32 %s259, %s260
      %s262 = smul.addr %s261, 8
      %s263 = scalar_lea.vmem %s5, %s262
      %s264 = smul.u32 4, %s22
      %v265 = vld [vmem:[%s1] sm:$0xff]
      %v266 = vld [vmem:[%s1 + $0x8] sm:$0xff]
      %v267 = vld [vmem:[%s1 + $0x10] sm:$0xff]
      %v268 = vld [vmem:[%s1 + $0x18] sm:$0xff]
      %v269 = vld [vmem:[%s1 + $0x20] sm:$0xff]
      %v270 = vld [vmem:[%s1 + $0x28] sm:$0xff]
      %v271 = vld [vmem:[%s1 + $0x30] sm:$0xff]
      %v272 = vld [vmem:[%s1 + $0x38] sm:$0xff]
      %v273 = vld [vmem:[%s253] sm:$0xff]
      %v274 = vld [vmem:[%s253 + $0x8] sm:$0xff]
      %v277 = vcombine.high %v273, %v273
      %v278 = vcombine.high %v274, %v274
      %vm279 = vcmask 31744
      %v281 = vsel %vm279, %v265, 0
      %v284 = vsel %vm279, %v266, 0
      %v287 = vsel %vm279, %v267, 0
      %v290 = vsel %vm279, %v268, 0
      %v293 = vsel %vm279, %v269, 0
      %v296 = vsel %vm279, %v270, 0
      %v299 = vsel %vm279, %v271, 0
      %v302 = vsel %vm279, %v272, 0
      %vm304 = vcmask 1043456
      %v305 = vsel %vm304, %v273, 0
      %v307 = vsel %vm304, %v277, 0
      %v309 = vsel %vm304, %v274, 0
      %v311 = vsel %vm304, %v278, 0
      %313 = vmatprep.subr.mxu0 %v307
      %314 = vmatpush1.msra.mxu0 %v305
      %315 = vmatprep.subr.mxu0 0.0
      %316 = vmatpush1.msra.mxu0 0.0
      %317 = vmatprep.subr.mxu0 0.0
      %318 = vmatpush1.msra.mxu0 0.0
      %319 = vmatprep.subr.mxu0 0.0
      %320 = vmatpush1.msra.mxu0 0.0
      %321 = vmatprep.subr.mxu0 0.0
      %322 = vmatpush1.msra.mxu0 0.0
      %323 = vmatprep.subr.mxu0 0.0
      %324 = vmatpush1.msra.mxu0 0.0
      %325 = vmatprep.subr.mxu0 0.0
      %326 = vmatpush1.msra.mxu0 0.0
      %327 = vmatprep.subr.mxu0 0.0
      %328 = vmatpush1.msra.mxu0 0.0
      %329 = vmatprep.subr.mxu0 0.0
      %330 = vmatpush1.msra.mxu0 0.0
      %331 = vmatprep.subr.mxu0 0.0
      %332 = vmatpush1.msra.mxu0 0.0
      %333 = vmatprep.subr.mxu0 0.0
      %334 = vmatpush1.msra.mxu0 0.0
      %335 = vmatprep.subr.mxu0 0.0
      %336 = vmatpush1.msra.mxu0 0.0
      %337 = vmatprep.subr.mxu0 0.0
      %338 = vmatpush1.msra.mxu0 0.0
      %339 = vmatprep.subr.mxu0 0.0
      %340 = vmatpush1.msra.mxu0 0.0
      %341 = vmatprep.subr.mxu0 0.0
      %342 = vmatpush1.msra.mxu0 0.0
      %343 = vmatprep.subr.mxu0 0.0
      %344 = vmatpush1.msra.mxu0 0.0
      %345 = vmatprep.subr.mxu0 0.0
      %346 = vmatpush1.msra.mxu0 0.0
      %347 = vmatprep.subr.mxu0 0.0
      %348 = vmatpush1.msra.mxu0 0.0
      %349 = vmatprep.subr.mxu0 0.0
      %350 = vmatpush1.msra.mxu0 0.0
      %351 = vmatprep.subr.mxu0 0.0
      %352 = vmatpush1.msra.mxu0 0.0
      %353 = vmatprep.subr.mxu0 0.0
      %354 = vmatpush1.msra.mxu0 0.0
      %355 = vmatprep.subr.mxu0 0.0
      %356 = vmatpush1.msra.mxu0 0.0
      %357 = vmatprep.subr.mxu0 0.0
      %358 = vmatpush1.msra.mxu0 0.0
      %359 = vmatprep.subr.mxu0 0.0
      %360 = vmatpush1.msra.mxu0 0.0
      %361 = vmatprep.subr.mxu0 0.0
      %362 = vmatpush1.msra.mxu0 0.0
      %363 = vmatprep.subr.mxu0 0.0
      %364 = vmatpush1.msra.mxu0 0.0
      %365 = vmatprep.subr.mxu0 0.0
      %366 = vmatpush1.msra.mxu0 0.0
      %367 = vmatprep.subr.mxu0 0.0
      %368 = vmatpush1.msra.mxu0 0.0
      %369 = vmatprep.subr.mxu0 0.0
      %370 = vmatpush1.msra.mxu0 0.0
      %371 = vmatprep.subr.mxu0 0.0
      %372 = vmatpush1.msra.mxu0 0.0
      %373 = vmatprep.subr.mxu0 0.0
      %374 = vmatpush1.msra.mxu0 0.0
      %375 = vmatprep.subr.mxu0 0.0
      %376 = vmatpush1.msra.mxu0 0.0
      %377 = vmatprep.mubr.f32.mxu0 0.0
      %378 = vmatmul.mubr.f32.gmra.mrb[0].mxu0 %v281
      %v379 = vpop.f32.mrb[0].mxu0
      %v380 = vadd.f32 0.0, %v379
      %v381 = vpop.f32.mrb[0].mxu0
      %v382 = vadd.f32 0.0, %v381
      %383 = vmatprep.mubr.f32.mxu0 0.0
      %384 = vmatmul.mubr.f32.gmra.mrb[0].mxu0 %v284
      %v385 = vpop.f32.mrb[0].mxu0
      %v386 = vadd.f32 0.0, %v385
      %v387 = vpop.f32.mrb[0].mxu0
      %v388 = vadd.f32 0.0, %v387
      %389 = vmatprep.mubr.f32.mxu0 0.0
      %390 = vmatmul.mubr.f32.gmra.mrb[0].mxu0 %v287
      %v391 = vpop.f32.mrb[0].mxu0
      %v392 = vadd.f32 0.0, %v391
      %v393 = vpop.f32.mrb[0].mxu0
      %v394 = vadd.f32 0.0, %v393
      %395 = vmatprep.mubr.f32.mxu0 0.0
      %396 = vmatmul.mubr.f32.gmra.mrb[0].mxu0 %v290
      %v397 = vpop.f32.mrb[0].mxu0
      %v398 = vadd.f32 0.0, %v397
      %v399 = vpop.f32.mrb[0].mxu0
      %v400 = vadd.f32 0.0, %v399
      %401 = vmatprep.mubr.f32.mxu0 0.0
      %402 = vmatmul.mubr.f32.gmra.mrb[0].mxu0 %v293
      %v403 = vpop.f32.mrb[0].mxu0
      %v404 = vadd.f32 0.0, %v403
      %v405 = vpop.f32.mrb[0].mxu0
      %v406 = vadd.f32 0.0, %v405
      %407 = vmatprep.mubr.f32.mxu0 0.0
      %408 = vmatmul.mubr.f32.gmra.mrb[0].mxu0 %v296
      %v409 = vpop.f32.mrb[0].mxu0
      %v410 = vadd.f32 0.0, %v409
      %v411 = vpop.f32.mrb[0].mxu0
      %v412 = vadd.f32 0.0, %v411
      %413 = vmatprep.mubr.f32.mxu0 0.0
      %414 = vmatmul.mubr.f32.gmra.mrb[0].mxu0 %v299
      %v415 = vpop.f32.mrb[0].mxu0
      %v416 = vadd.f32 0.0, %v415
      %v417 = vpop.f32.mrb[0].mxu0
      %v418 = vadd.f32 0.0, %v417
      %419 = vmatprep.mubr.f32.mxu0 0.0
      %420 = vmatmul.mubr.f32.gmra.mrb[0].mxu0 %v302
      %v421 = vpop.f32.mrb[0].mxu0
      %v422 = vadd.f32 0.0, %v421
      %v423 = vpop.f32.mrb[0].mxu0
      %v424 = vadd.f32 0.0, %v423
      %425 = vdwg.mxu0
      %426 = vmatprep.subr.mxu0 %v311
      %427 = vmatpush1.msra.mxu0 %v309
      %428 = vmatprep.subr.mxu0 0.0
      %429 = vmatpush1.msra.mxu0 0.0
      %430 = vmatprep.subr.mxu0 0.0
      %431 = vmatpush1.msra.mxu0 0.0
      %432 = vmatprep.subr.mxu0 0.0
      %433 = vmatpush1.msra.mxu0 0.0
      %434 = vmatprep.subr.mxu0 0.0
      %435 = vmatpush1.msra.mxu0 0.0
      %436 = vmatprep.subr.mxu0 0.0
      %437 = vmatpush1.msra.mxu0 0.0
      %438 = vmatprep.subr.mxu0 0.0
      %439 = vmatpush1.msra.mxu0 0.0
      %440 = vmatprep.subr.mxu0 0.0
      %441 = vmatpush1.msra.mxu0 0.0
      %442 = vmatprep.subr.mxu0 0.0
      %443 = vmatpush1.msra.mxu0 0.0
      %444 = vmatprep.subr.mxu0 0.0
      %445 = vmatpush1.msra.mxu0 0.0
      %446 = vmatprep.subr.mxu0 0.0
      %447 = vmatpush1.msra.mxu0 0.0
      %448 = vmatprep.subr.mxu0 0.0
      %449 = vmatpush1.msra.mxu0 0.0
      %450 = vmatprep.subr.mxu0 0.0
      %451 = vmatpush1.msra.mxu0 0.0
      %452 = vmatprep.subr.mxu0 0.0
      %453 = vmatpush1.msra.mxu0 0.0
      %454 = vmatprep.subr.mxu0 0.0
      %455 = vmatpush1.msra.mxu0 0.0
      %456 = vmatprep.subr.mxu0 0.0
      %457 = vmatpush1.msra.mxu0 0.0
      %458 = vmatprep.subr.mxu0 0.0
      %459 = vmatpush1.msra.mxu0 0.0
      %460 = vmatprep.subr.mxu0 0.0
      %461 = vmatpush1.msra.mxu0 0.0
      %462 = vmatprep.subr.mxu0 0.0
      %463 = vmatpush1.msra.mxu0 0.0
      %464 = vmatprep.subr.mxu0 0.0
      %465 = vmatpush1.msra.mxu0 0.0
      %466 = vmatprep.subr.mxu0 0.0
      %467 = vmatpush1.msra.mxu0 0.0
      %468 = vmatprep.subr.mxu0 0.0
      %469 = vmatpush1.msra.mxu0 0.0
      %470 = vmatprep.subr.mxu0 0.0
      %471 = vmatpush1.msra.mxu0 0.0
      %472 = vmatprep.subr.mxu0 0.0
      %473 = vmatpush1.msra.mxu0 0.0
      %474 = vmatprep.subr.mxu0 0.0
      %475 = vmatpush1.msra.mxu0 0.0
      %476 = vmatprep.subr.mxu0 0.0
      %477 = vmatpush1.msra.mxu0 0.0
      %478 = vmatprep.subr.mxu0 0.0
      %479 = vmatpush1.msra.mxu0 0.0
      %480 = vmatprep.subr.mxu0 0.0
      %481 = vmatpush1.msra.mxu0 0.0
      %482 = vmatprep.subr.mxu0 0.0
      %483 = vmatpush1.msra.mxu0 0.0
      %484 = vmatprep.subr.mxu0 0.0
      %485 = vmatpush1.msra.mxu0 0.0
      %486 = vmatprep.subr.mxu0 0.0
      %487 = vmatpush1.msra.mxu0 0.0
      %488 = vmatprep.subr.mxu0 0.0
      %489 = vmatpush1.msra.mxu0 0.0
      %490 = vmatprep.mubr.f32.mxu0 0.0
      %491 = vmatmul.mubr.f32.gmra.mrb[0].mxu0 %v281
      %v492 = vpop.f32.mrb[0].mxu0
      %v493 = vadd.f32 0.0, %v492
      %v494 = vpop.f32.mrb[0].mxu0
      %v495 = vadd.f32 0.0, %v494
      %496 = vmatprep.mubr.f32.mxu0 0.0
      %497 = vmatmul.mubr.f32.gmra.mrb[0].mxu0 %v284
      %v498 = vpop.f32.mrb[0].mxu0
      %v499 = vadd.f32 0.0, %v498
      %v500 = vpop.f32.mrb[0].mxu0
      %v501 = vadd.f32 0.0, %v500
      %502 = vmatprep.mubr.f32.mxu0 0.0
      %503 = vmatmul.mubr.f32.gmra.mrb[0].mxu0 %v287
      %v504 = vpop.f32.mrb[0].mxu0
      %v505 = vadd.f32 0.0, %v504
      %v506 = vpop.f32.mrb[0].mxu0
      %v507 = vadd.f32 0.0, %v506
      %508 = vmatprep.mubr.f32.mxu0 0.0
      %509 = vmatmul.mubr.f32.gmra.mrb[0].mxu0 %v290
      %v510 = vpop.f32.mrb[0].mxu0
      %v511 = vadd.f32 0.0, %v510
      %v512 = vpop.f32.mrb[0].mxu0
      %v513 = vadd.f32 0.0, %v512
      %514 = vmatprep.mubr.f32.mxu0 0.0
      %515 = vmatmul.mubr.f32.gmra.mrb[0].mxu0 %v293
      %v516 = vpop.f32.mrb[0].mxu0
      %v517 = vadd.f32 0.0, %v516
      %v518 = vpop.f32.mrb[0].mxu0
      %v519 = vadd.f32 0.0, %v518
      %520 = vmatprep.mubr.f32.mxu0 0.0
      %521 = vmatmul.mubr.f32.gmra.mrb[0].mxu0 %v296
      %v522 = vpop.f32.mrb[0].mxu0
      %v523 = vadd.f32 0.0, %v522
      %v524 = vpop.f32.mrb[0].mxu0
      %v525 = vadd.f32 0.0, %v524
      %526 = vmatprep.mubr.f32.mxu0 0.0
      %527 = vmatmul.mubr.f32.gmra.mrb[0].mxu0 %v299
      %v528 = vpop.f32.mrb[0].mxu0
      %v529 = vadd.f32 0.0, %v528
      %v530 = vpop.f32.mrb[0].mxu0
      %v531 = vadd.f32 0.0, %v530
      %532 = vmatprep.mubr.f32.mxu0 0.0
      %533 = vmatmul.mubr.f32.gmra.mrb[0].mxu0 %v302
      %v534 = vpop.f32.mrb[0].mxu0
      %v535 = vadd.f32 0.0, %v534
      %v536 = vpop.f32.mrb[0].mxu0
      %v537 = vadd.f32 0.0, %v536
      %538 = vdwg.mxu0
      %v539 = vld [vmem:[%s2] sm:$0xff]
      %v540 = vld [vmem:[%s2 + $0x8] sm:$0xff]
      %v541 = vld [vmem:[%s2 + $0x10] sm:$0xff]
      %v542 = vld [vmem:[%s2 + $0x18] sm:$0xff]
      %v543 = vld [vmem:[%s2 + $0x20] sm:$0xff]
      %v544 = vld [vmem:[%s2 + $0x28] sm:$0xff]
      %v545 = vld [vmem:[%s2 + $0x30] sm:$0xff]
      %v546 = vld [vmem:[%s2 + $0x38] sm:$0xff]
      %548 = vset.pattern.permute.xlu0 0
      %549 = vperm.xlu0 %548, %v539
      %v550 = vpop.permute.xlu0 %549
      %553 = vset.pattern.permute.xlu0 0
      %554 = vperm.xlu0 %553, %v540
      %v555 = vpop.permute.xlu0 %554
      %558 = vset.pattern.permute.xlu0 0
      %559 = vperm.xlu0 %558, %v541
      %v560 = vpop.permute.xlu0 %559
      %563 = vset.pattern.permute.xlu0 0
      %564 = vperm.xlu0 %563, %v542
      %v565 = vpop.permute.xlu0 %564
      %568 = vset.pattern.permute.xlu0 0
      %569 = vperm.xlu0 %568, %v543
      %v570 = vpop.permute.xlu0 %569
      %573 = vset.pattern.permute.xlu0 0
      %574 = vperm.xlu0 %573, %v544
      %v575 = vpop.permute.xlu0 %574
      %578 = vset.pattern.permute.xlu0 0
      %579 = vperm.xlu0 %578, %v545
      %v580 = vpop.permute.xlu0 %579
      %583 = vset.pattern.permute.xlu0 0
      %584 = vperm.xlu0 %583, %v546
      %v585 = vpop.permute.xlu0 %584
      %v587 = vmul.f32 %v380, %v550
      %v588 = vmul.f32 %v382, %v550
      %v589 = vmul.f32 %v493, %v550
      %v590 = vmul.f32 %v495, %v550
      %v591 = vmul.f32 %v386, %v555
      %v592 = vmul.f32 %v388, %v555
      %v593 = vmul.f32 %v499, %v555
      %v594 = vmul.f32 %v501, %v555
      %v595 = vmul.f32 %v392, %v560
      %v596 = vmul.f32 %v394, %v560
      %v597 = vmul.f32 %v505, %v560
      %v598 = vmul.f32 %v507, %v560
      %v599 = vmul.f32 %v398, %v565
      %v600 = vmul.f32 %v400, %v565
      %v601 = vmul.f32 %v511, %v565
      %v602 = vmul.f32 %v513, %v565
      %v603 = vmul.f32 %v404, %v570
      %v604 = vmul.f32 %v406, %v570
      %v605 = vmul.f32 %v517, %v570
      %v606 = vmul.f32 %v519, %v570
      %v607 = vmul.f32 %v410, %v575
      %v608 = vmul.f32 %v412, %v575
      %v609 = vmul.f32 %v523, %v575
      %v610 = vmul.f32 %v525, %v575
      %v611 = vmul.f32 %v416, %v580
      %v612 = vmul.f32 %v418, %v580
      %v613 = vmul.f32 %v529, %v580
      %v614 = vmul.f32 %v531, %v580
      %v615 = vmul.f32 %v422, %v585
      %v616 = vmul.f32 %v424, %v585
      %v617 = vmul.f32 %v535, %v585
      %v618 = vmul.f32 %v537, %v585
      %v619 = vld [vmem:[%s3] sm:$0xff]
      %v620 = vld [vmem:[%s3 + $0x8] sm:$0xff]
      %v621 = vld [vmem:[%s3 + $0x10] sm:$0xff]
      %v622 = vld [vmem:[%s3 + $0x18] sm:$0xff]
      %v623 = vld [vmem:[%s3 + $0x20] sm:$0xff]
      %v624 = vld [vmem:[%s3 + $0x28] sm:$0xff]
      %v625 = vld [vmem:[%s3 + $0x30] sm:$0xff]
      %v626 = vld [vmem:[%s3 + $0x38] sm:$0xff]
      %628 = vset.pattern.permute.xlu0 0
      %629 = vperm.xlu0 %628, %v619
      %v630 = vpop.permute.xlu0 %629
      %633 = vset.pattern.permute.xlu0 0
      %634 = vperm.xlu0 %633, %v620
      %v635 = vpop.permute.xlu0 %634
      %638 = vset.pattern.permute.xlu0 0
      %639 = vperm.xlu0 %638, %v621
      %v640 = vpop.permute.xlu0 %639
      %643 = vset.pattern.permute.xlu0 0
      %644 = vperm.xlu0 %643, %v622
      %v645 = vpop.permute.xlu0 %644
      %648 = vset.pattern.permute.xlu0 0
      %649 = vperm.xlu0 %648, %v623
      %v650 = vpop.permute.xlu0 %649
      %653 = vset.pattern.permute.xlu0 0
      %654 = vperm.xlu0 %653, %v624
      %v655 = vpop.permute.xlu0 %654
      %658 = vset.pattern.permute.xlu0 0
      %659 = vperm.xlu0 %658, %v625
      %v660 = vpop.permute.xlu0 %659
      %663 = vset.pattern.permute.xlu0 0
      %664 = vperm.xlu0 %663, %v626
      %v665 = vpop.permute.xlu0 %664
      %v667 = vadd.f32 %v587, %v630
      %v668 = vadd.f32 %v588, %v630
      %v669 = vadd.f32 %v589, %v630
      %v670 = vadd.f32 %v590, %v630
      %v671 = vadd.f32 %v591, %v635
      %v672 = vadd.f32 %v592, %v635
      %v673 = vadd.f32 %v593, %v635
      %v674 = vadd.f32 %v594, %v635
      %v675 = vadd.f32 %v595, %v640
      %v676 = vadd.f32 %v596, %v640
      %v677 = vadd.f32 %v597, %v640
      %v678 = vadd.f32 %v598, %v640
      %v679 = vadd.f32 %v599, %v645
      %v680 = vadd.f32 %v600, %v645
      %v681 = vadd.f32 %v601, %v645
      %v682 = vadd.f32 %v602, %v645
      %v683 = vadd.f32 %v603, %v650
      %v684 = vadd.f32 %v604, %v650
      %v685 = vadd.f32 %v605, %v650
      %v686 = vadd.f32 %v606, %v650
      %v687 = vadd.f32 %v607, %v655
      %v688 = vadd.f32 %v608, %v655
      %v689 = vadd.f32 %v609, %v655
      %v690 = vadd.f32 %v610, %v655
      %v691 = vadd.f32 %v611, %v660
      %v692 = vadd.f32 %v612, %v660
      %v693 = vadd.f32 %v613, %v660
      %v694 = vadd.f32 %v614, %v660
      %v695 = vadd.f32 %v615, %v665
      %v696 = vadd.f32 %v616, %v665
      %v697 = vadd.f32 %v617, %v665
      %v698 = vadd.f32 %v618, %v665
      %s699 = sld [smem:[#allocation2]]
      %vm700 = vcmp.ge.f32.partialorder %v667, 0.0
      %vm701 = vcmp.ge.f32.partialorder %v668, 0.0
      %vm702 = vcmp.ge.f32.partialorder %v669, 0.0
      %vm703 = vcmp.ge.f32.partialorder %v670, 0.0
      %vm704 = vcmp.ge.f32.partialorder %v671, 0.0
      %vm705 = vcmp.ge.f32.partialorder %v672, 0.0
      %vm706 = vcmp.ge.f32.partialorder %v673, 0.0
      %vm707 = vcmp.ge.f32.partialorder %v674, 0.0
      %vm708 = vcmp.ge.f32.partialorder %v675, 0.0
      %vm709 = vcmp.ge.f32.partialorder %v676, 0.0
      %vm710 = vcmp.ge.f32.partialorder %v677, 0.0
      %vm711 = vcmp.ge.f32.partialorder %v678, 0.0
      %vm712 = vcmp.ge.f32.partialorder %v679, 0.0
      %vm713 = vcmp.ge.f32.partialorder %v680, 0.0
      %vm714 = vcmp.ge.f32.partialorder %v681, 0.0
      %vm715 = vcmp.ge.f32.partialorder %v682, 0.0
      %vm716 = vcmp.ge.f32.partialorder %v683, 0.0
      %vm717 = vcmp.ge.f32.partialorder %v684, 0.0
      %vm718 = vcmp.ge.f32.partialorder %v685, 0.0
      %vm719 = vcmp.ge.f32.partialorder %v686, 0.0
      %vm720 = vcmp.ge.f32.partialorder %v687, 0.0
      %vm721 = vcmp.ge.f32.partialorder %v688, 0.0
      %vm722 = vcmp.ge.f32.partialorder %v689, 0.0
      %vm723 = vcmp.ge.f32.partialorder %v690, 0.0
      %vm724 = vcmp.ge.f32.partialorder %v691, 0.0
      %vm725 = vcmp.ge.f32.partialorder %v692, 0.0
      %vm726 = vcmp.ge.f32.partialorder %v693, 0.0
      %vm727 = vcmp.ge.f32.partialorder %v694, 0.0
      %vm728 = vcmp.ge.f32.partialorder %v695, 0.0
      %vm729 = vcmp.ge.f32.partialorder %v696, 0.0
      %vm730 = vcmp.ge.f32.partialorder %v697, 0.0
      %vm731 = vcmp.ge.f32.partialorder %v698, 0.0
      %v732 = vstv %s699
      %v733 = vmul.f32 %v732, %v667
      %v734 = vmul.f32 %v732, %v668
      %v735 = vmul.f32 %v732, %v669
      %v736 = vmul.f32 %v732, %v670
      %v737 = vmul.f32 %v732, %v671
      %v738 = vmul.f32 %v732, %v672
      %v739 = vmul.f32 %v732, %v673
      %v740 = vmul.f32 %v732, %v674
      %v741 = vmul.f32 %v732, %v675
      %v742 = vmul.f32 %v732, %v676
      %v743 = vmul.f32 %v732, %v677
      %v744 = vmul.f32 %v732, %v678
      %v745 = vmul.f32 %v732, %v679
      %v746 = vmul.f32 %v732, %v680
      %v747 = vmul.f32 %v732, %v681
      %v748 = vmul.f32 %v732, %v682
      %v749 = vmul.f32 %v732, %v683
      %v750 = vmul.f32 %v732, %v684
      %v751 = vmul.f32 %v732, %v685
      %v752 = vmul.f32 %v732, %v686
      %v753 = vmul.f32 %v732, %v687
      %v754 = vmul.f32 %v732, %v688
      %v755 = vmul.f32 %v732, %v689
      %v756 = vmul.f32 %v732, %v690
      %v757 = vmul.f32 %v732, %v691
      %v758 = vmul.f32 %v732, %v692
      %v759 = vmul.f32 %v732, %v693
      %v760 = vmul.f32 %v732, %v694
      %v761 = vmul.f32 %v732, %v695
      %v762 = vmul.f32 %v732, %v696
      %v763 = vmul.f32 %v732, %v697
      %v764 = vmul.f32 %v732, %v698
      %v765 = vsel %vm700, %v667, %v733
      %v766 = vsel %vm701, %v668, %v734
      %v767 = vsel %vm702, %v669, %v735
      %v768 = vsel %vm703, %v670, %v736
      %v769 = vsel %vm704, %v671, %v737
      %v770 = vsel %vm705, %v672, %v738
      %v771 = vsel %vm706, %v673, %v739
      %v772 = vsel %vm707, %v674, %v740
      %v773 = vsel %vm708, %v675, %v741
      %v774 = vsel %vm709, %v676, %v742
      %v775 = vsel %vm710, %v677, %v743
      %v776 = vsel %vm711, %v678, %v744
      %v777 = vsel %vm712, %v679, %v745
      %v778 = vsel %vm713, %v680, %v746
      %v779 = vsel %vm714, %v681, %v747
      %v780 = vsel %vm715, %v682, %v748
      %v781 = vsel %vm716, %v683, %v749
      %v782 = vsel %vm717, %v684, %v750
      %v783 = vsel %vm718, %v685, %v751
      %v784 = vsel %vm719, %v686, %v752
      %v785 = vsel %vm720, %v687, %v753
      %v786 = vsel %vm721, %v688, %v754
      %v787 = vsel %vm722, %v689, %v755
      %v788 = vsel %vm723, %v690, %v756
      %v789 = vsel %vm724, %v691, %v757
      %v790 = vsel %vm725, %v692, %v758
      %v791 = vsel %vm726, %v693, %v759
      %v792 = vsel %vm727, %v694, %v760
      %v793 = vsel %vm728, %v695, %v761
      %v794 = vsel %vm729, %v696, %v762
      %v795 = vsel %vm730, %v697, %v763
      %v796 = vsel %vm731, %v698, %v764
      %797 = vst [vmem:[%s263] sm:$0xff] %v765
      %798 = vst [vmem:[%s263 + $0x8] sm:$0xff] %v766
      %799 = vst [vmem:[%s263 + $0x10] sm:$0xff] %v767
      %800 = vst [vmem:[%s263 + $0x18] sm:$0xff] %v768
      %801 = vst [vmem:[%s263 + $0x20] sm:$0xff] %v769
      %802 = vst [vmem:[%s263 + $0x28] sm:$0xff] %v770
      %803 = vst [vmem:[%s263 + $0x30] sm:$0xff] %v771
      %804 = vst [vmem:[%s263 + $0x38] sm:$0xff] %v772
      %805 = vst [vmem:[%s263 + $0x40] sm:$0xff] %v773
      %806 = vst [vmem:[%s263 + $0x48] sm:$0xff] %v774
      %807 = vst [vmem:[%s263 + $0x50] sm:$0xff] %v775
      %808 = vst [vmem:[%s263 + $0x58] sm:$0xff] %v776
      %809 = vst [vmem:[%s263 + $0x60] sm:$0xff] %v777
      %810 = vst [vmem:[%s263 + $0x68] sm:$0xff] %v778
      %811 = vst [vmem:[%s263 + $0x70] sm:$0xff] %v779
      %812 = vst [vmem:[%s263 + $0x78] sm:$0xff] %v780
      %813 = vst [vmem:[%s263 + $0x80] sm:$0xff] %v781
      %814 = vst [vmem:[%s263 + $0x88] sm:$0xff] %v782
      %815 = vst [vmem:[%s263 + $0x90] sm:$0xff] %v783
      %816 = vst [vmem:[%s263 + $0x98] sm:$0xff] %v784
      %817 = vst [vmem:[%s263 + $0xa0] sm:$0xff] %v785
      %818 = vst [vmem:[%s263 + $0xa8] sm:$0xff] %v786
      %819 = vst [vmem:[%s263 + $0xb0] sm:$0xff] %v787
      %820 = vst [vmem:[%s263 + $0xb8] sm:$0xff] %v788
      %821 = vst [vmem:[%s263 + $0xc0] sm:$0xff] %v789
      %822 = vst [vmem:[%s263 + $0xc8] sm:$0xff] %v790
      %823 = vst [vmem:[%s263 + $0xd0] sm:$0xff] %v791
      %824 = vst [vmem:[%s263 + $0xd8] sm:$0xff] %v792
      %825 = vst [vmem:[%s263 + $0xe0] sm:$0xff] %v793
      %826 = vst [vmem:[%s263 + $0xe8] sm:$0xff] %v794
      %827 = vst [vmem:[%s263 + $0xf0] sm:$0xff] %v795
      %828 = vst [vmem:[%s263 + $0xf8] sm:$0xff] %v796
      %s829 = smul.u32 4, %s22
      %p830 = scmp.lt.s32.totalorder %s21, 1
      %s831 = scalar_select %p830, %s21, 1
      %p832 = scmp.lt.s32.totalorder %s829, 3
      %s833 = scalar_select %p832, %s829, 3
      %s834 = smul.addr %s831, 32
      %s835 = sadd.s32 %s833, %s834
      %s836 = smul.addr %s835, 8
      %s837 = scalar_lea.vmem %s5, %s836
      // Predicated region
      $region41: #{upsampling_forward.3} parent=39 // pred_check
        %p838 = pneg %p161
      $region42: #{upsampling_forward.3} parent=39 // pred_check_branch
        %840 = sbr.rel (%p838) target = $region44
      $region43: #{upsampling_forward.3} parent=39 // pred_region
        %s841 = smul.u32 4, %s22
      $region44: #{upsampling_forward.3} parent=39 // pred_fallthru
        _
    $region40: #{upsampling_forward.3} parent=5 // pred_fallthru
      _
    %p842 = scmp.le.s32.totalorder 2, %s12
    // Predicated region
    $region45: #{upsampling_forward.3} parent=5 // pred_check
      %p843 = pneg %p842
    $region46: #{upsampling_forward.3} parent=5 // pred_check_branch
      %845 = sbr.rel (%p843) target = $region48
    $region47: #{upsampling_forward.3} parent=5 // pred_region
      %s846 = ssub.s32 %s12, 2
      // Predicated region
      $region49: #{upsampling_forward.3} parent=47 // pred_check
        %p847 = pneg %p167
      $region50: #{upsampling_forward.3} parent=47 // pred_check_branch
        %849 = sbr.rel (%p847) target = $region52
      $region51: #{upsampling_forward.3} parent=47 // pred_region
        %s850 = smul.u32 4, %s24
        %p851 = scmp.lt.s32.totalorder %s23, 1
        %s852 = scalar_select %p851, %s23, 1
        %p853 = scmp.lt.s32.totalorder %s850, 3
        %s854 = scalar_select %p853, %s850, 3
        %s855 = smul.addr %s852, 32
        %s856 = sadd.s32 %s854, %s855
        %s857 = smul.addr %s856, 8
        %s858 = scalar_lea.vmem %s5, %s857
      $region52: #{upsampling_forward.3} parent=47 // pred_fallthru
        _
    $region48: #{upsampling_forward.3} parent=5 // pred_fallthru
      _
  $region6: #{upsampling_forward.3} parent=0 // loop_footer
    %s16 = sadd.s32 1, %s12
  $region7: #{upsampling_forward.3} parent=0 // loop_footer_branch
    %11 = sbr.rel target = $region3
  $region8: #{upsampling_forward.3} parent=0 // loop_exit
    _

</llo_original>
